<compile_context>
chip_gen: v5e
topology: v5e:2x2
jax: 0.10.0
libtpu: 0.0.40
codegen_flags: <defaults>
</compile_context>

<pallas_src>
import functools

import jax
import jax.numpy as jnp
from jax.experimental import pallas as pl
from jax.experimental.pallas import tpu as pltpu


def rnn_kernel(x_ref, rnn_w_ref, fc_w_ref, out_ref, *,
               seq_len, batch_pad, in_rows, hidden):
    P = jax.lax.Precision.HIGHEST  # pinned fp32 contraction precision

    # Static, sublane-aligned slices of the packed parameter slab (no DMA,
    # zero-cost ref views).
    wih = rnn_w_ref[0:in_rows, :]                          # (I_pad, H)  = W_ih^T
    b = rnn_w_ref[in_rows:in_rows + 1, :]                  # (1, H) fused b_ih + b_hh
    whh = rnn_w_ref[in_rows + 8:in_rows + 8 + hidden, :]   # (H, H)      = W_hh^T

    # ---- Input projection for ALL timesteps in ONE MXU call (not on the
    #      serial dependency chain).  x_ref: (T*B_pad, I_pad) -> (T*B_pad, H).
    p = jnp.dot(x_ref[...], wih,
                preferred_element_type=jnp.float32, precision=P) + b

    # ---- Serial recurrence, fully unrolled (T is a small static constant):
    #      per step only h @ W_hh^T + tanh.  Static slices of `p` stay in vregs.
    # TODO(synk): if the bundle dump shows Mosaic re-pushing W_hh^T into the MXU
    # every step, stage it once with pltpu.matmul_push_rhs / matmul_acc_lhs.
    h = jnp.zeros((batch_pad, hidden), jnp.float32)
    for t in range(seq_len):
        p_t = p[t * batch_pad:(t + 1) * batch_pad, :]      # (B_pad, H), static slice
        h = jnp.tanh(p_t + jnp.dot(h, whh,
                                   preferred_element_type=jnp.float32,
                                   precision=P))

    # ---- Final Linear on the last hidden state; output tile is lane-dense
    #      (O padded to 128 in the packed slab).
    wfc = fc_w_ref[0:hidden, :]                            # (H, O_pad) = W_fc^T
    bfc = fc_w_ref[hidden:hidden + 1, :]                   # (1, O_pad)
    out_ref[...] = (jnp.dot(h, wfc,
                            preferred_element_type=jnp.float32, precision=P)
                    + bfc).astype(out_ref.dtype)


def make_rnn_forward(w_ih, w_hh, b_ih, b_hh, w_fc, b_fc):
    """Precompute packed parameter slabs once (call-invariant layout work) and
    return a jitted forward(x) that runs a single pallas_call."""
    H, I = w_ih.shape
    O = w_fc.shape[0]

    I_pad = ((I + 7) // 8) * 8            # keep the W_hh row offset sublane-aligned
    O_pad = ((O + 127) // 128) * 128      # lane-dense output

    # rnn_slab rows: [0, I_pad)       -> W_ih^T      (zero-padded rows if I < I_pad)
    #                [I_pad, I_pad+8) -> fused bias in row I_pad (rest zero)
    #                [I_pad+8, +H)    -> W_hh^T
    rnn_rows = I_pad + 8 + H
    rnn_slab = jnp.zeros((rnn_rows, H), jnp.float32)
    rnn_slab = rnn_slab.at[:I, :].set(w_ih.T.astype(jnp.float32))
    rnn_slab = rnn_slab.at[I_pad, :].set((b_ih + b_hh).astype(jnp.float32))
    rnn_slab = rnn_slab.at[I_pad + 8:, :].set(w_hh.T.astype(jnp.float32))

    # fc_slab rows: [0, H) -> W_fc^T (lane-padded), row H -> b_fc (lane-padded).
    fc_rows = H + 8
    fc_slab = jnp.zeros((fc_rows, O_pad), jnp.float32)
    fc_slab = fc_slab.at[:H, :O].set(w_fc.T.astype(jnp.float32))
    fc_slab = fc_slab.at[H, :O].set(b_fc.astype(jnp.float32))

    @jax.jit
    def forward(x):
        T, B, _ = x.shape
        B_pad = ((B + 7) // 8) * 8        # f32 sublane tile

        # x pad/reshape fuses inside this jit; padded rows/cols are zero.
        x_p = jnp.zeros((T, B_pad, I_pad), jnp.float32)
        x_p = x_p.at[:, :B, :I].set(x.astype(jnp.float32))
        x2 = x_p.reshape(T * B_pad, I_pad)    # one MXU LHS slab for the projection

        kernel = functools.partial(rnn_kernel, seq_len=T, batch_pad=B_pad,
                                   in_rows=I_pad, hidden=H)

        grid_spec = pltpu.PrefetchScalarGridSpec(
            num_scalar_prefetch=0,
            grid=(1,),                        # single invocation; loop lives in-kernel
            in_specs=[
                pl.BlockSpec((T * B_pad, I_pad), lambda i: (0, 0)),  # whole sequence
                pl.BlockSpec((rnn_rows, H), lambda i: (0, 0)),       # packed RNN params
                pl.BlockSpec((fc_rows, O_pad), lambda i: (0, 0)),    # packed FC params
            ],
            out_specs=pl.BlockSpec((B_pad, O_pad), lambda i: (0, 0)),
        )

        out_pad = pl.pallas_call(
            kernel,
            out_shape=jax.ShapeDtypeStruct((B_pad, O_pad), jnp.float32),
            grid_spec=grid_spec,
            compiler_params=pltpu.CompilerParams(
                dimension_semantics=("arbitrary",),
            ),
        )(x2, rnn_slab, fc_slab)

        # TODO(synk): for large batches on v7x, add a leading parallel batch-grid
        # axis (per-core hidden-state scratch) to use both TensorCores.
        # TODO(synk): for long sequences on v7x (32 MiB scoped VMEM), chunk T via
        # pltpu.emit_pipeline instead of keeping the whole sequence resident.
        return out_pad[:B, :O]

    return forward


def rnn_reference(x, w_ih, w_hh, b_ih, b_hh, w_fc, b_fc):
    T, B, I = x.shape
    H = w_ih.shape[0]
    h = jnp.zeros((B, H), jnp.float32)
    for t in range(T):
        h = jnp.tanh(x[t] @ w_ih.T + b_ih + h @ w_hh.T + b_hh)
    return h @ w_fc.T + b_fc


if __name__ == "__main__":
    # Small shapes consistent with the module's forward:
    # seq=8, batch=2, input_size=16, hidden_size=64, output_size=2.
    T, B, I, H, O = 8, 2, 16, 64, 2

    key = jax.random.PRNGKey(0)
    ks = jax.random.split(key, 7)
    bound = 1.0 / jnp.sqrt(H)  # PyTorch default init range for nn.RNN / nn.Linear
    x = jax.random.normal(ks[0], (T, B, I), jnp.float32)
    w_ih = jax.random.uniform(ks[1], (H, I), jnp.float32, -bound, bound)
    w_hh = jax.random.uniform(ks[2], (H, H), jnp.float32, -bound, bound)
    b_ih = jax.random.uniform(ks[3], (H,), jnp.float32, -bound, bound)
    b_hh = jax.random.uniform(ks[4], (H,), jnp.float32, -bound, bound)
    w_fc = jax.random.uniform(ks[5], (O, H), jnp.float32, -bound, bound)
    b_fc = jax.random.uniform(ks[6], (O,), jnp.float32, -bound, bound)

    forward = make_rnn_forward(w_ih, w_hh, b_ih, b_hh, w_fc, b_fc)
    out = forward(x)
    jax.block_until_ready(out)

    ref = rnn_reference(x, w_ih, w_hh, b_ih, b_hh, w_fc, b_fc)
    assert out.shape == (B, O)
    assert jnp.allclose(out, ref, atol=1e-5, rtol=1e-5), (out, ref)
    print("KERNEL_OK")
</pallas_src>

<mosaic_0001>
module attributes {stable_mosaic.version = 11 : i64} {
  func.func @rnn_kernel(%arg0: i32, %arg1: memref<64x16xf32, #tpu.memory_space<vmem>>, %arg2: memref<88x64xf32, #tpu.memory_space<vmem>>, %arg3: memref<72x128xf32, #tpu.memory_space<vmem>>, %arg4: memref<8x128xf32, #tpu.memory_space<vmem>>) attributes {dimension_semantics = [#tpu.dimension_semantics<arbitrary>], iteration_bounds = array<i64: 1>, scalar_prefetch = 0 : i64, scratch_operands = 0 : i64, tpu.core_type = #tpu.core_type<tc>, window_params = [{pipeline_mode = #tpu.pipeline_mode<synchronous>, transform_indices = @transform_0, window_bounds = array<i64: 64, 16>}, {pipeline_mode = #tpu.pipeline_mode<synchronous>, transform_indices = @transform_1, window_bounds = array<i64: 88, 64>}, {pipeline_mode = #tpu.pipeline_mode<synchronous>, transform_indices = @transform_2, window_bounds = array<i64: 72, 128>}, {pipeline_mode = #tpu.pipeline_mode<synchronous>, transform_indices = @transform_3, window_bounds = array<i64: 8, 128>}]} {
    %c0 = arith.constant 0 : index
    %c0_0 = arith.constant 0 : index
    %0 = vector.load %arg2[%c0, %c0_0] : memref<88x64xf32, #tpu.memory_space<vmem>>, vector<16x64xf32>
    %c16 = arith.constant 16 : index
    %c0_1 = arith.constant 0 : index
    %1 = vector.load %arg2[%c16, %c0_1] : memref<88x64xf32, #tpu.memory_space<vmem>>, vector<1x64xf32>
    %c24 = arith.constant 24 : index
    %c0_2 = arith.constant 0 : index
    %2 = vector.load %arg2[%c24, %c0_2] : memref<88x64xf32, #tpu.memory_space<vmem>>, vector<64x64xf32>
    %c0_3 = arith.constant 0 : index
    %c0_4 = arith.constant 0 : index
    %3 = vector.load %arg1[%c0_3, %c0_4] : memref<64x16xf32, #tpu.memory_space<vmem>>, vector<64x16xf32>
    %cst = arith.constant dense<0.000000e+00> : vector<64x64xf32>
    %4 = tpu.matmul %3, %0, %cst {dimension_numbers = #tpu.dot_dimension_numbers<[1], [0], [0], [1], [0, 0, 1, 1], [], []>, precision = #tpu.contract_precision<fp32>} : vector<64x16xf32>, vector<16x64xf32>, vector<64x64xf32> -> vector<64x64xf32>
    %5 = vector.broadcast %1 : vector<1x64xf32> to vector<64x64xf32>
    %6 = arith.addf %4, %5 : vector<64x64xf32>
    %cst_5 = arith.constant 0.000000e+00 : f32
    %7 = vector.broadcast %cst_5 : f32 to vector<8x64xf32>
    %8 = vector.extract_strided_slice %6 {offsets = [0, 0], sizes = [8, 64], strides = [1, 1]} : vector<64x64xf32> to vector<8x64xf32>
    %cst_6 = arith.constant dense<0.000000e+00> : vector<8x64xf32>
    %9 = tpu.matmul %7, %2, %cst_6 {dimension_numbers = #tpu.dot_dimension_numbers<[1], [0], [0], [1], [0, 0, 1, 1], [], []>, precision = #tpu.contract_precision<fp32>} : vector<8x64xf32>, vector<64x64xf32>, vector<8x64xf32> -> vector<8x64xf32>
    %10 = arith.addf %8, %9 : vector<8x64xf32>
    %11 = math.tanh %10 : vector<8x64xf32>
    %12 = vector.extract_strided_slice %6 {offsets = [8, 0], sizes = [8, 64], strides = [1, 1]} : vector<64x64xf32> to vector<8x64xf32>
    %cst_7 = arith.constant dense<0.000000e+00> : vector<8x64xf32>
    %13 = tpu.matmul %11, %2, %cst_7 {dimension_numbers = #tpu.dot_dimension_numbers<[1], [0], [0], [1], [0, 0, 1, 1], [], []>, precision = #tpu.contract_precision<fp32>} : vector<8x64xf32>, vector<64x64xf32>, vector<8x64xf32> -> vector<8x64xf32>
    %14 = arith.addf %12, %13 : vector<8x64xf32>
    %15 = math.tanh %14 : vector<8x64xf32>
    %16 = vector.extract_strided_slice %6 {offsets = [16, 0], sizes = [8, 64], strides = [1, 1]} : vector<64x64xf32> to vector<8x64xf32>
    %cst_8 = arith.constant dense<0.000000e+00> : vector<8x64xf32>
    %17 = tpu.matmul %15, %2, %cst_8 {dimension_numbers = #tpu.dot_dimension_numbers<[1], [0], [0], [1], [0, 0, 1, 1], [], []>, precision = #tpu.contract_precision<fp32>} : vector<8x64xf32>, vector<64x64xf32>, vector<8x64xf32> -> vector<8x64xf32>
    %18 = arith.addf %16, %17 : vector<8x64xf32>
    %19 = math.tanh %18 : vector<8x64xf32>
    %20 = vector.extract_strided_slice %6 {offsets = [24, 0], sizes = [8, 64], strides = [1, 1]} : vector<64x64xf32> to vector<8x64xf32>
    %cst_9 = arith.constant dense<0.000000e+00> : vector<8x64xf32>
    %21 = tpu.matmul %19, %2, %cst_9 {dimension_numbers = #tpu.dot_dimension_numbers<[1], [0], [0], [1], [0, 0, 1, 1], [], []>, precision = #tpu.contract_precision<fp32>} : vector<8x64xf32>, vector<64x64xf32>, vector<8x64xf32> -> vector<8x64xf32>
    %22 = arith.addf %20, %21 : vector<8x64xf32>
    %23 = math.tanh %22 : vector<8x64xf32>
    %24 = vector.extract_strided_slice %6 {offsets = [32, 0], sizes = [8, 64], strides = [1, 1]} : vector<64x64xf32> to vector<8x64xf32>
    %cst_10 = arith.constant dense<0.000000e+00> : vector<8x64xf32>
    %25 = tpu.matmul %23, %2, %cst_10 {dimension_numbers = #tpu.dot_dimension_numbers<[1], [0], [0], [1], [0, 0, 1, 1], [], []>, precision = #tpu.contract_precision<fp32>} : vector<8x64xf32>, vector<64x64xf32>, vector<8x64xf32> -> vector<8x64xf32>
    %26 = arith.addf %24, %25 : vector<8x64xf32>
    %27 = math.tanh %26 : vector<8x64xf32>
    %28 = vector.extract_strided_slice %6 {offsets = [40, 0], sizes = [8, 64], strides = [1, 1]} : vector<64x64xf32> to vector<8x64xf32>
    %cst_11 = arith.constant dense<0.000000e+00> : vector<8x64xf32>
    %29 = tpu.matmul %27, %2, %cst_11 {dimension_numbers = #tpu.dot_dimension_numbers<[1], [0], [0], [1], [0, 0, 1, 1], [], []>, precision = #tpu.contract_precision<fp32>} : vector<8x64xf32>, vector<64x64xf32>, vector<8x64xf32> -> vector<8x64xf32>
    %30 = arith.addf %28, %29 : vector<8x64xf32>
    %31 = math.tanh %30 : vector<8x64xf32>
    %32 = vector.extract_strided_slice %6 {offsets = [48, 0], sizes = [8, 64], strides = [1, 1]} : vector<64x64xf32> to vector<8x64xf32>
    %cst_12 = arith.constant dense<0.000000e+00> : vector<8x64xf32>
    %33 = tpu.matmul %31, %2, %cst_12 {dimension_numbers = #tpu.dot_dimension_numbers<[1], [0], [0], [1], [0, 0, 1, 1], [], []>, precision = #tpu.contract_precision<fp32>} : vector<8x64xf32>, vector<64x64xf32>, vector<8x64xf32> -> vector<8x64xf32>
    %34 = arith.addf %32, %33 : vector<8x64xf32>
    %35 = math.tanh %34 : vector<8x64xf32>
    %36 = vector.extract_strided_slice %6 {offsets = [56, 0], sizes = [8, 64], strides = [1, 1]} : vector<64x64xf32> to vector<8x64xf32>
    %cst_13 = arith.constant dense<0.000000e+00> : vector<8x64xf32>
    %37 = tpu.matmul %35, %2, %cst_13 {dimension_numbers = #tpu.dot_dimension_numbers<[1], [0], [0], [1], [0, 0, 1, 1], [], []>, precision = #tpu.contract_precision<fp32>} : vector<8x64xf32>, vector<64x64xf32>, vector<8x64xf32> -> vector<8x64xf32>
    %38 = arith.addf %36, %37 : vector<8x64xf32>
    %39 = math.tanh %38 : vector<8x64xf32>
    %c0_14 = arith.constant 0 : index
    %c0_15 = arith.constant 0 : index
    %40 = vector.load %arg3[%c0_14, %c0_15] : memref<72x128xf32, #tpu.memory_space<vmem>>, vector<64x128xf32>
    %c64 = arith.constant 64 : index
    %c0_16 = arith.constant 0 : index
    %41 = vector.load %arg3[%c64, %c0_16] : memref<72x128xf32, #tpu.memory_space<vmem>>, vector<1x128xf32>
    %cst_17 = arith.constant dense<0.000000e+00> : vector<8x128xf32>
    %42 = tpu.matmul %39, %40, %cst_17 {dimension_numbers = #tpu.dot_dimension_numbers<[1], [0], [0], [1], [0, 0, 1, 1], [], []>, precision = #tpu.contract_precision<fp32>} : vector<8x64xf32>, vector<64x128xf32>, vector<8x128xf32> -> vector<8x128xf32>
    %43 = vector.broadcast %41 : vector<1x128xf32> to vector<8x128xf32>
    %44 = arith.addf %42, %43 : vector<8x128xf32>
    %c0_18 = arith.constant 0 : index
    %c0_19 = arith.constant 0 : index
    %45 = vector.load %arg4[%c0_18, %c0_19] : memref<8x128xf32, #tpu.memory_space<vmem>>, vector<8x128xf32>
    tpu.vector_store %arg4[%c0_18, %c0_19], %44 {strides = array<i32>} : memref<8x128xf32, #tpu.memory_space<vmem>>, vector<8x128xf32>,
    return
  }
  func.func @transform_0(%arg0: i32) -> (i32, i32) {
    %c0_i32 = arith.constant 0 : i32
    %c0_i32_0 = arith.constant 0 : i32
    %c0_i32_1 = arith.constant 0 : i32
    return %c0_i32, %c0_i32_0 : i32, i32
  }
  func.func @transform_1(%arg0: i32) -> (i32, i32) {
    %c0_i32 = arith.constant 0 : i32
    %c0_i32_0 = arith.constant 0 : i32
    %c0_i32_1 = arith.constant 0 : i32
    return %c0_i32, %c0_i32_0 : i32, i32
  }
  func.func @transform_2(%arg0: i32) -> (i32, i32) {
    %c0_i32 = arith.constant 0 : i32
    %c0_i32_0 = arith.constant 0 : i32
    %c0_i32_1 = arith.constant 0 : i32
    return %c0_i32, %c0_i32_0 : i32, i32
  }
  func.func @transform_3(%arg0: i32) -> (i32, i32) {
    %c0_i32 = arith.constant 0 : i32
    %c0_i32_0 = arith.constant 0 : i32
    %c0_i32_1 = arith.constant 0 : i32
    return %c0_i32, %c0_i32_0 : i32, i32
  }
}

</mosaic_0001>

<llo_original>
// kernel: forward.1
$region0: #{forward.1}
  #allocation0 [shape = 'u32[]', space=smem, size = 0x4, offset = 0x4, fixed_abs, tag = 'smem constant byte address 0x4 - core index']
  #allocation1 [shape = 'u32[72,128]{1,0:T(1,128)}', space=vmem, size = 0x9000, scoped, tag = 'internal scratch']
  %s0 = inlined_call_operand.vmem [shape: f32[64,16], index: 0, kind: input, shape index: {}]
  %s1 = inlined_call_operand.hbm [shape: f32[88,64], index: 1, kind: input, shape index: {}]
  %s2 = inlined_call_operand.vmem [shape: f32[72,128], index: 2, kind: input, shape index: {}]
  %s3 = inlined_call_operand.vmem [shape: f32[8,128], index: 3, kind: output, shape index: {}]
  %s4 = sld [smem:[#allocation0]]
  $region26: #{forward.1} parent=0
    _
  %s6 = ssub.s32 1, %s4
  %s7 = scalar_select 0, %s6, %s4
  $region1: #{forward.1} parent=0
    #allocation2 [shape = 'u8[45056]{0}', space=vmem, size = 0xb000, scoped, tag = 'input window, operand 1, single buffered']
    #allocation3 [shape = 's32[1]{0}', space=sflag, size = 0x4, scoped, tag = 'scoped memory for forward.1']
    %8 = vsyncpa [#allocation3], 0
    // Predicated region
    $region2: #{forward.1} parent=1 // pred_check
      _
    $region3: #{forward.1} parent=1 // pred_check_branch
      %10 = sbr.rel (0) target = $region5
    $region4: #{forward.1} parent=1 // pred_region
      _
    $region5: #{forward.1} parent=1 // pred_fallthru
      _
    // Predicated region
    $region6: #{forward.1} parent=1 // pred_check
      _
    $region7: #{forward.1} parent=1 // pred_check_branch
      %12 = sbr.rel (0) target = $region9
    $region8: #{forward.1} parent=1 // pred_region
      %14 = vsyncadd [#allocation3], 0
      %s15 = sshll.u32 %s1, 4
      %s16 = int_to_ptr.hbm [resolvable:$true] %s15
      %s17 = sshll.u32 [#allocation2], 4
      %s18 = int_to_ptr.vmem [resolvable:$true] %s17
      %23 = dma.hbm_to_vmem [thread:$0]  %s16, 1408, %s18, [#allocation3], 128, 128, 8
    $region9: #{forward.1} parent=1 // pred_fallthru
      _
    // Predicated region
    $region10: #{forward.1} parent=1 // pred_check
      _
    $region11: #{forward.1} parent=1 // pred_check_branch
      %25 = sbr.rel (0) target = $region13
    $region12: #{forward.1} parent=1 // pred_region
      _
    $region13: #{forward.1} parent=1 // pred_fallthru
      _
    // Predicated region
    $region14: #{forward.1} parent=1 // pred_check
      _
    $region15: #{forward.1} parent=1 // pred_check_branch
      %27 = sbr.rel (0) target = $region17
    $region16: #{forward.1} parent=1 // pred_region
      %29 = dma.done [#allocation3], 1408
    $region17: #{forward.1} parent=1 // pred_fallthru
      _
    %v30 = vld [vmem:[#allocation2] sm:$0xff]
    %v31 = vld [vmem:[#allocation2 + $0x8] sm:$0xff]
    %v32 = vld [vmem:[#allocation2 + $0x10] sm:$0x1]
    %v33 = vld [vmem:[#allocation2 + $0x18] sm:$0xff]
    %v34 = vld [vmem:[#allocation2 + $0x20] sm:$0xff]
    %v35 = vld [vmem:[#allocation2 + $0x28] sm:$0xff]
    %v36 = vld [vmem:[#allocation2 + $0x30] sm:$0xff]
    %v37 = vld [vmem:[#allocation2 + $0x38] sm:$0xff]
    %v38 = vld [vmem:[#allocation2 + $0x40] sm:$0xff]
    %v39 = vld [vmem:[#allocation2 + $0x48] sm:$0xff]
    %v40 = vld [vmem:[#allocation2 + $0x50] sm:$0xff]
    %v41 = vld [vmem:[%s0] sm:$0xff]
    %v42 = vld [vmem:[%s0 + $0x8] sm:$0xff]
    %v43 = vld [vmem:[%s0 + $0x10] sm:$0xff]
    %v44 = vld [vmem:[%s0 + $0x18] sm:$0xff]
    %v45 = vld [vmem:[%s0 + $0x20] sm:$0xff]
    %v46 = vld [vmem:[%s0 + $0x28] sm:$0xff]
    %v47 = vld [vmem:[%s0 + $0x30] sm:$0xff]
    %v48 = vld [vmem:[%s0 + $0x38] sm:$0xff]
    %v49 = vperm.slane %v32, 0
    %vm50 = vcmask 130048
    %v52 = vsel %vm50, %v41, 0
    %v55 = vsel %vm50, %v42, 0
    %v58 = vsel %vm50, %v43, 0
    %v61 = vsel %vm50, %v44, 0
    %v64 = vsel %vm50, %v45, 0
    %v67 = vsel %vm50, %v46, 0
    %v70 = vsel %vm50, %v47, 0
    %v73 = vsel %vm50, %v48, 0
    %75 = vmatpush.msra.mxu0 0.0
    %76 = vmatpush.msra.mxu0 0.0
    %77 = vmatpush.msra.mxu0 0.0
    %78 = vmatpush.msra.mxu0 0.0
    %79 = vmatpush.msra.mxu0 0.0
    %80 = vmatpush.msra.mxu0 0.0
    %81 = vmatpush.msra.mxu0 0.0
    %82 = vmatpush.msra.mxu0 0.0
    %83 = vmatpush.msra.mxu0 0.0
    %84 = vmatpush.msra.mxu0 0.0
    %85 = vmatpush.msra.mxu0 0.0
    %86 = vmatpush.msra.mxu0 0.0
    %87 = vmatpush.msra.mxu0 0.0
    %88 = vmatpush.msra.mxu0 0.0
    %v89 = vand.u32 %v31, 4294901760
    %90 = vmatpush.msra.mxu0 %v89
    %v91 = vand.u32 %v30, 4294901760
    %92 = vmatpush.msra.mxu0 %v91
    %v93 = vand.u32 %v52, 4294901760
    %v94 = vsub.f32 %v52, %v93
    %v95 = vand.u32 %v94, 4294901760
    %v96 = vsub.f32 %v94, %v95
    %v97 = vand.u32 %v96, 4294901760
    %98 = vmatmul.f32.gmra.mxu0 %v97
    %v99 = vpop.f32.mrf.mxu0
    %v100 = vadd.f32 %v49, %v99
    %v101 = vand.u32 %v55, 4294901760
    %v102 = vsub.f32 %v55, %v101
    %v103 = vand.u32 %v102, 4294901760
    %v104 = vsub.f32 %v102, %v103
    %v105 = vand.u32 %v104, 4294901760
    %106 = vmatmul.f32.gmra.mxu0 %v105
    %v107 = vpop.f32.mrf.mxu0
    %v108 = vadd.f32 %v49, %v107
    %v109 = vand.u32 %v58, 4294901760
    %v110 = vsub.f32 %v58, %v109
    %v111 = vand.u32 %v110, 4294901760
    %v112 = vsub.f32 %v110, %v111
    %v113 = vand.u32 %v112, 4294901760
    %114 = vmatmul.f32.gmra.mxu0 %v113
    %v115 = vpop.f32.mrf.mxu0
    %v116 = vadd.f32 %v49, %v115
    %v117 = vand.u32 %v61, 4294901760
    %v118 = vsub.f32 %v61, %v117
    %v119 = vand.u32 %v118, 4294901760
    %v120 = vsub.f32 %v118, %v119
    %v121 = vand.u32 %v120, 4294901760
    %122 = vmatmul.f32.gmra.mxu0 %v121
    %v123 = vpop.f32.mrf.mxu0
    %v124 = vadd.f32 %v49, %v123
    %v125 = vand.u32 %v64, 4294901760
    %v126 = vsub.f32 %v64, %v125
    %v127 = vand.u32 %v126, 4294901760
    %v128 = vsub.f32 %v126, %v127
    %v129 = vand.u32 %v128, 4294901760
    %130 = vmatmul.f32.gmra.mxu0 %v129
    %v131 = vpop.f32.mrf.mxu0
    %v132 = vadd.f32 %v49, %v131
    %v133 = vand.u32 %v67, 4294901760
    %v134 = vsub.f32 %v67, %v133
    %v135 = vand.u32 %v134, 4294901760
    %v136 = vsub.f32 %v134, %v135
    %v137 = vand.u32 %v136, 4294901760
    %138 = vmatmul.f32.gmra.mxu0 %v137
    %v139 = vpop.f32.mrf.mxu0
    %v140 = vadd.f32 %v49, %v139
    %v141 = vand.u32 %v70, 4294901760
    %v142 = vsub.f32 %v70, %v141
    %v143 = vand.u32 %v142, 4294901760
    %v144 = vsub.f32 %v142, %v143
    %v145 = vand.u32 %v144, 4294901760
    %146 = vmatmul.f32.gmra.mxu0 %v145
    %v147 = vpop.f32.mrf.mxu0
    %v148 = vadd.f32 %v49, %v147
    %v149 = vand.u32 %v73, 4294901760
    %v150 = vsub.f32 %v73, %v149
    %v151 = vand.u32 %v150, 4294901760
    %v152 = vsub.f32 %v150, %v151
    %v153 = vand.u32 %v152, 4294901760
    %154 = vmatmul.f32.gmra.mxu0 %v153
    %v155 = vpop.f32.mrf.mxu0
    %v156 = vadd.f32 %v49, %v155
    %157 = vdwg.mxu0
    %158 = vmatpush.msra.mxu0 0.0
    %159 = vmatpush.msra.mxu0 0.0
    %160 = vmatpush.msra.mxu0 0.0
    %161 = vmatpush.msra.mxu0 0.0
    %162 = vmatpush.msra.mxu0 0.0
    %163 = vmatpush.msra.mxu0 0.0
    %164 = vmatpush.msra.mxu0 0.0
    %165 = vmatpush.msra.mxu0 0.0
    %166 = vmatpush.msra.mxu0 0.0
    %167 = vmatpush.msra.mxu0 0.0
    %168 = vmatpush.msra.mxu0 0.0
    %169 = vmatpush.msra.mxu0 0.0
    %170 = vmatpush.msra.mxu0 0.0
    %171 = vmatpush.msra.mxu0 0.0
    %v172 = vand.u32 %v31, 4294901760
    %v173 = vsub.f32 %v31, %v172
    %v174 = vand.u32 %v173, 4294901760
    %v175 = vsub.f32 %v173, %v174
    %v176 = vand.u32 %v175, 4294901760
    %177 = vmatpush.msra.mxu0 %v176
    %v178 = vand.u32 %v30, 4294901760
    %v179 = vsub.f32 %v30, %v178
    %v180 = vand.u32 %v179, 4294901760
    %v181 = vsub.f32 %v179, %v180
    %v182 = vand.u32 %v181, 4294901760
    %183 = vmatpush.msra.mxu0 %v182
    %v184 = vand.u32 %v52, 4294901760
    %185 = vmatmul.f32.gmra.mxu0 %v184
    %v186 = vpop.f32.mrf.mxu0
    %v187 = vadd.f32 %v100, %v186
    %v188 = vand.u32 %v55, 4294901760
    %189 = vmatmul.f32.gmra.mxu0 %v188
    %v190 = vpop.f32.mrf.mxu0
    %v191 = vadd.f32 %v108, %v190
    %v192 = vand.u32 %v58, 4294901760
    %193 = vmatmul.f32.gmra.mxu0 %v192
    %v194 = vpop.f32.mrf.mxu0
    %v195 = vadd.f32 %v116, %v194
    %v196 = vand.u32 %v61, 4294901760
    %197 = vmatmul.f32.gmra.mxu0 %v196
    %v198 = vpop.f32.mrf.mxu0
    %v199 = vadd.f32 %v124, %v198
    %v200 = vand.u32 %v64, 4294901760
    %201 = vmatmul.f32.gmra.mxu0 %v200
    %v202 = vpop.f32.mrf.mxu0
    %v203 = vadd.f32 %v132, %v202
    %v204 = vand.u32 %v67, 4294901760
    %205 = vmatmul.f32.gmra.mxu0 %v204
    %v206 = vpop.f32.mrf.mxu0
    %v207 = vadd.f32 %v140, %v206
    %v208 = vand.u32 %v70, 4294901760
    %209 = vmatmul.f32.gmra.mxu0 %v208
    %v210 = vpop.f32.mrf.mxu0
    %v211 = vadd.f32 %v148, %v210
    %v212 = vand.u32 %v73, 4294901760
    %213 = vmatmul.f32.gmra.mxu0 %v212
    %v214 = vpop.f32.mrf.mxu0
    %v215 = vadd.f32 %v156, %v214
    %216 = vdwg.mxu0
    %217 = vmatpush.msra.mxu0 0.0
    %218 = vmatpush.msra.mxu0 0.0
    %219 = vmatpush.msra.mxu0 0.0
    %220 = vmatpush.msra.mxu0 0.0
    %221 = vmatpush.msra.mxu0 0.0
    %222 = vmatpush.msra.mxu0 0.0
    %223 = vmatpush.msra.mxu0 0.0
    %224 = vmatpush.msra.mxu0 0.0
    %225 = vmatpush.msra.mxu0 0.0
    %226 = vmatpush.msra.mxu0 0.0
    %227 = vmatpush.msra.mxu0 0.0
    %228 = vmatpush.msra.mxu0 0.0
    %229 = vmatpush.msra.mxu0 0.0
    %230 = vmatpush.msra.mxu0 0.0
    %v231 = vand.u32 %v31, 4294901760
    %v232 = vsub.f32 %v31, %v231
    %233 = vmatpush.msra.mxu0 %v232
    %v234 = vand.u32 %v30, 4294901760
    %v235 = vsub.f32 %v30, %v234
    %236 = vmatpush.msra.mxu0 %v235
    %v237 = vand.u32 %v52, 4294901760
    %v238 = vsub.f32 %v52, %v237
    %239 = vmatmul.f32.gmra.mxu0 %v238
    %v240 = vpop.f32.mrf.mxu0
    %v241 = vadd.f32 %v187, %v240
    %v242 = vand.u32 %v55, 4294901760
    %v243 = vsub.f32 %v55, %v242
    %244 = vmatmul.f32.gmra.mxu0 %v243
    %v245 = vpop.f32.mrf.mxu0
    %v246 = vadd.f32 %v191, %v245
    %v247 = vand.u32 %v58, 4294901760
    %v248 = vsub.f32 %v58, %v247
    %249 = vmatmul.f32.gmra.mxu0 %v248
    %v250 = vpop.f32.mrf.mxu0
    %v251 = vadd.f32 %v195, %v250
    %v252 = vand.u32 %v61, 4294901760
    %v253 = vsub.f32 %v61, %v252
    %254 = vmatmul.f32.gmra.mxu0 %v253
    %v255 = vpop.f32.mrf.mxu0
    %v256 = vadd.f32 %v199, %v255
    %v257 = vand.u32 %v64, 4294901760
    %v258 = vsub.f32 %v64, %v257
    %259 = vmatmul.f32.gmra.mxu0 %v258
    %v260 = vpop.f32.mrf.mxu0
    %v261 = vadd.f32 %v203, %v260
    %v262 = vand.u32 %v67, 4294901760
    %v263 = vsub.f32 %v67, %v262
    %264 = vmatmul.f32.gmra.mxu0 %v263
    %v265 = vpop.f32.mrf.mxu0
    %v266 = vadd.f32 %v207, %v265
    %v267 = vand.u32 %v70, 4294901760
    %v268 = vsub.f32 %v70, %v267
    %269 = vmatmul.f32.gmra.mxu0 %v268
    %v270 = vpop.f32.mrf.mxu0
    %v271 = vadd.f32 %v211, %v270
    %v272 = vand.u32 %v73, 4294901760
    %v273 = vsub.f32 %v73, %v272
    %274 = vmatmul.f32.gmra.mxu0 %v273
    %v275 = vpop.f32.mrf.mxu0
    %v276 = vadd.f32 %v215, %v275
    %277 = vdwg.mxu0
    %278 = vmatpush.msra.mxu0 0.0
    %279 = vmatpush.msra.mxu0 0.0
    %280 = vmatpush.msra.mxu0 0.0
    %281 = vmatpush.msra.mxu0 0.0
    %282 = vmatpush.msra.mxu0 0.0
    %283 = vmatpush.msra.mxu0 0.0
    %284 = vmatpush.msra.mxu0 0.0
    %285 = vmatpush.msra.mxu0 0.0
    %286 = vmatpush.msra.mxu0 0.0
    %287 = vmatpush.msra.mxu0 0.0
    %288 = vmatpush.msra.mxu0 0.0
    %289 = vmatpush.msra.mxu0 0.0
    %290 = vmatpush.msra.mxu0 0.0
    %291 = vmatpush.msra.mxu0 0.0
    %v292 = vand.u32 %v31, 4294901760
    %293 = vmatpush.msra.mxu0 %v292
    %v294 = vand.u32 %v30, 4294901760
    %295 = vmatpush.msra.mxu0 %v294
    %v296 = vand.u32 %v52, 4294901760
    %v297 = vsub.f32 %v52, %v296
    %v298 = vand.u32 %v297, 4294901760
    %299 = vmatmul.f32.gmra.mxu0 %v298
    %v300 = vpop.f32.mrf.mxu0
    %v301 = vadd.f32 %v241, %v300
    %v302 = vand.u32 %v55, 4294901760
    %v303 = vsub.f32 %v55, %v302
    %v304 = vand.u32 %v303, 4294901760
    %305 = vmatmul.f32.gmra.mxu0 %v304
    %v306 = vpop.f32.mrf.mxu0
    %v307 = vadd.f32 %v246, %v306
    %v308 = vand.u32 %v58, 4294901760
    %v309 = vsub.f32 %v58, %v308
    %v310 = vand.u32 %v309, 4294901760
    %311 = vmatmul.f32.gmra.mxu0 %v310
    %v312 = vpop.f32.mrf.mxu0
    %v313 = vadd.f32 %v251, %v312
    %v314 = vand.u32 %v61, 4294901760
    %v315 = vsub.f32 %v61, %v314
    %v316 = vand.u32 %v315, 4294901760
    %317 = vmatmul.f32.gmra.mxu0 %v316
    %v318 = vpop.f32.mrf.mxu0
    %v319 = vadd.f32 %v256, %v318
    %v320 = vand.u32 %v64, 4294901760
    %v321 = vsub.f32 %v64, %v320
    %v322 = vand.u32 %v321, 4294901760
    %323 = vmatmul.f32.gmra.mxu0 %v322
    %v324 = vpop.f32.mrf.mxu0
    %v325 = vadd.f32 %v261, %v324
    %v326 = vand.u32 %v67, 4294901760
    %v327 = vsub.f32 %v67, %v326
    %v328 = vand.u32 %v327, 4294901760
    %329 = vmatmul.f32.gmra.mxu0 %v328
    %v330 = vpop.f32.mrf.mxu0
    %v331 = vadd.f32 %v266, %v330
    %v332 = vand.u32 %v70, 4294901760
    %v333 = vsub.f32 %v70, %v332
    %v334 = vand.u32 %v333, 4294901760
    %335 = vmatmul.f32.gmra.mxu0 %v334
    %v336 = vpop.f32.mrf.mxu0
    %v337 = vadd.f32 %v271, %v336
    %v338 = vand.u32 %v73, 4294901760
    %v339 = vsub.f32 %v73, %v338
    %v340 = vand.u32 %v339, 4294901760
    %341 = vmatmul.f32.gmra.mxu0 %v340
    %v342 = vpop.f32.mrf.mxu0
    %v343 = vadd.f32 %v276, %v342
    %344 = vdwg.mxu0
    %345 = vmatpush.msra.mxu0 0.0
    %346 = vmatpush.msra.mxu0 0.0
    %347 = vmatpush.msra.mxu0 0.0
    %348 = vmatpush.msra.mxu0 0.0
    %349 = vmatpush.msra.mxu0 0.0
    %350 = vmatpush.msra.mxu0 0.0
    %351 = vmatpush.msra.mxu0 0.0
    %352 = vmatpush.msra.mxu0 0.0
    %353 = vmatpush.msra.mxu0 0.0
    %354 = vmatpush.msra.mxu0 0.0
    %355 = vmatpush.msra.mxu0 0.0
    %356 = vmatpush.msra.mxu0 0.0
    %357 = vmatpush.msra.mxu0 0.0
    %358 = vmatpush.msra.mxu0 0.0
    %v359 = vand.u32 %v31, 4294901760
    %v360 = vsub.f32 %v31, %v359
    %v361 = vand.u32 %v360, 4294901760
    %362 = vmatpush.msra.mxu0 %v361
    %v363 = vand.u32 %v30, 4294901760
    %v364 = vsub.f32 %v30, %v363
    %v365 = vand.u32 %v364, 4294901760
    %366 = vmatpush.msra.mxu0 %v365
    %v367 = vand.u32 %v52, 4294901760
    %368 = vmatmul.f32.gmra.mxu0 %v367
    %v369 = vpop.f32.mrf.mxu0
    %v370 = vadd.f32 %v301, %v369
    %v371 = vand.u32 %v55, 4294901760
    %372 = vmatmul.f32.gmra.mxu0 %v371
    %v373 = vpop.f32.mrf.mxu0
    %v374 = vadd.f32 %v307, %v373
    %v375 = vand.u32 %v58, 4294901760
    %376 = vmatmul.f32.gmra.mxu0 %v375
    %v377 = vpop.f32.mrf.mxu0
    %v378 = vadd.f32 %v313, %v377
    %v379 = vand.u32 %v61, 4294901760
    %380 = vmatmul.f32.gmra.mxu0 %v379
    %v381 = vpop.f32.mrf.mxu0
    %v382 = vadd.f32 %v319, %v381
    %v383 = vand.u32 %v64, 4294901760
    %384 = vmatmul.f32.gmra.mxu0 %v383
    %v385 = vpop.f32.mrf.mxu0
    %v386 = vadd.f32 %v325, %v385
    %v387 = vand.u32 %v67, 4294901760
    %388 = vmatmul.f32.gmra.mxu0 %v387
    %v389 = vpop.f32.mrf.mxu0
    %v390 = vadd.f32 %v331, %v389
    %v391 = vand.u32 %v70, 4294901760
    %392 = vmatmul.f32.gmra.mxu0 %v391
    %v393 = vpop.f32.mrf.mxu0
    %v394 = vadd.f32 %v337, %v393
    %v395 = vand.u32 %v73, 4294901760
    %396 = vmatmul.f32.gmra.mxu0 %v395
    %v397 = vpop.f32.mrf.mxu0
    %v398 = vadd.f32 %v343, %v397
    %399 = vdwg.mxu0
    %400 = vmatpush.msra.mxu0 0.0
    %401 = vmatpush.msra.mxu0 0.0
    %402 = vmatpush.msra.mxu0 0.0
    %403 = vmatpush.msra.mxu0 0.0
    %404 = vmatpush.msra.mxu0 0.0
    %405 = vmatpush.msra.mxu0 0.0
    %406 = vmatpush.msra.mxu0 0.0
    %407 = vmatpush.msra.mxu0 0.0
    %408 = vmatpush.msra.mxu0 0.0
    %409 = vmatpush.msra.mxu0 0.0
    %410 = vmatpush.msra.mxu0 0.0
    %411 = vmatpush.msra.mxu0 0.0
    %412 = vmatpush.msra.mxu0 0.0
    %413 = vmatpush.msra.mxu0 0.0
    %v414 = vand.u32 %v31, 4294901760
    %415 = vmatpush.msra.mxu0 %v414
    %v416 = vand.u32 %v30, 4294901760
    %417 = vmatpush.msra.mxu0 %v416
    %v418 = vand.u32 %v52, 4294901760
    %419 = vmatmul.f32.gmra.mxu0 %v418
    %v420 = vpop.f32.mrf.mxu0
    %v421 = vadd.f32 %v370, %v420
    %v422 = vand.u32 %v55, 4294901760
    %423 = vmatmul.f32.gmra.mxu0 %v422
    %v424 = vpop.f32.mrf.mxu0
    %v425 = vadd.f32 %v374, %v424
    %v426 = vand.u32 %v58, 4294901760
    %427 = vmatmul.f32.gmra.mxu0 %v426
    %v428 = vpop.f32.mrf.mxu0
    %v429 = vadd.f32 %v378, %v428
    %v430 = vand.u32 %v61, 4294901760
    %431 = vmatmul.f32.gmra.mxu0 %v430
    %v432 = vpop.f32.mrf.mxu0
    %v433 = vadd.f32 %v382, %v432
    %v434 = vand.u32 %v64, 4294901760
    %435 = vmatmul.f32.gmra.mxu0 %v434
    %v436 = vpop.f32.mrf.mxu0
    %v437 = vadd.f32 %v386, %v436
    %v438 = vand.u32 %v67, 4294901760
    %439 = vmatmul.f32.gmra.mxu0 %v438
    %v440 = vpop.f32.mrf.mxu0
    %v441 = vadd.f32 %v390, %v440
    %v442 = vand.u32 %v70, 4294901760
    %443 = vmatmul.f32.gmra.mxu0 %v442
    %v444 = vpop.f32.mrf.mxu0
    %v445 = vadd.f32 %v394, %v444
    %v446 = vand.u32 %v73, 4294901760
    %447 = vmatmul.f32.gmra.mxu0 %v446
    %v448 = vpop.f32.mrf.mxu0
    %v449 = vadd.f32 %v398, %v448
    %450 = vdwg.mxu0
    %vm451 = vcmask 523264
    %v453 = vsel %vm451, 0.0, 0
    %455 = vmatpush.msra.mxu0 0.0
    %456 = vmatpush.msra.mxu0 0.0
    %457 = vmatpush.msra.mxu0 0.0
    %458 = vmatpush.msra.mxu0 0.0
    %459 = vmatpush.msra.mxu0 0.0
    %460 = vmatpush.msra.mxu0 0.0
    %461 = vmatpush.msra.mxu0 0.0
    %462 = vmatpush.msra.mxu0 0.0
    %v463 = vand.u32 %v40, 4294901760
    %464 = vmatpush.msra.mxu0 %v463
    %v465 = vand.u32 %v39, 4294901760
    %466 = vmatpush.msra.mxu0 %v465
    %v467 = vand.u32 %v38, 4294901760
    %468 = vmatpush.msra.mxu0 %v467
    %v469 = vand.u32 %v37, 4294901760
    %470 = vmatpush.msra.mxu0 %v469
    %v471 = vand.u32 %v36, 4294901760
    %472 = vmatpush.msra.mxu0 %v471
    %v473 = vand.u32 %v35, 4294901760
    %474 = vmatpush.msra.mxu0 %v473
    %v475 = vand.u32 %v34, 4294901760
    %476 = vmatpush.msra.mxu0 %v475
    %v477 = vand.u32 %v33, 4294901760
    %478 = vmatpush.msra.mxu0 %v477
    %v479 = vand.u32 %v453, 4294901760
    %v480 = vsub.f32 %v453, %v479
    %v481 = vand.u32 %v480, 4294901760
    %v482 = vsub.f32 %v480, %v481
    %v483 = vand.u32 %v482, 4294901760
    %484 = vmatmul.f32.gmra.mxu0 %v483
    %v485 = vpop.f32.mrf.mxu0
    %v486 = vadd.f32 0.0, %v485
    %487 = vdwg.mxu0
    %488 = vmatpush.msra.mxu0 0.0
    %489 = vmatpush.msra.mxu0 0.0
    %490 = vmatpush.msra.mxu0 0.0
    %491 = vmatpush.msra.mxu0 0.0
    %492 = vmatpush.msra.mxu0 0.0
    %493 = vmatpush.msra.mxu0 0.0
    %494 = vmatpush.msra.mxu0 0.0
    %495 = vmatpush.msra.mxu0 0.0
    %v496 = vand.u32 %v40, 4294901760
    %v497 = vsub.f32 %v40, %v496
    %v498 = vand.u32 %v497, 4294901760
    %v499 = vsub.f32 %v497, %v498
    %v500 = vand.u32 %v499, 4294901760
    %501 = vmatpush.msra.mxu0 %v500
    %v502 = vand.u32 %v39, 4294901760
    %v503 = vsub.f32 %v39, %v502
    %v504 = vand.u32 %v503, 4294901760
    %v505 = vsub.f32 %v503, %v504
    %v506 = vand.u32 %v505, 4294901760
    %507 = vmatpush.msra.mxu0 %v506
    %v508 = vand.u32 %v38, 4294901760
    %v509 = vsub.f32 %v38, %v508
    %v510 = vand.u32 %v509, 4294901760
    %v511 = vsub.f32 %v509, %v510
    %v512 = vand.u32 %v511, 4294901760
    %513 = vmatpush.msra.mxu0 %v512
    %v514 = vand.u32 %v37, 4294901760
    %v515 = vsub.f32 %v37, %v514
    %v516 = vand.u32 %v515, 4294901760
    %v517 = vsub.f32 %v515, %v516
    %v518 = vand.u32 %v517, 4294901760
    %519 = vmatpush.msra.mxu0 %v518
    %v520 = vand.u32 %v36, 4294901760
    %v521 = vsub.f32 %v36, %v520
    %v522 = vand.u32 %v521, 4294901760
    %v523 = vsub.f32 %v521, %v522
    %v524 = vand.u32 %v523, 4294901760
    %525 = vmatpush.msra.mxu0 %v524
    %v526 = vand.u32 %v35, 4294901760
    %v527 = vsub.f32 %v35, %v526
    %v528 = vand.u32 %v527, 4294901760
    %v529 = vsub.f32 %v527, %v528
    %v530 = vand.u32 %v529, 4294901760
    %531 = vmatpush.msra.mxu0 %v530
    %v532 = vand.u32 %v34, 4294901760
    %v533 = vsub.f32 %v34, %v532
    %v534 = vand.u32 %v533, 4294901760
    %v535 = vsub.f32 %v533, %v534
    %v536 = vand.u32 %v535, 4294901760
    %537 = vmatpush.msra.mxu0 %v536
    %v538 = vand.u32 %v33, 4294901760
    %v539 = vsub.f32 %v33, %v538
    %v540 = vand.u32 %v539, 4294901760
    %v541 = vsub.f32 %v539, %v540
    %v542 = vand.u32 %v541, 4294901760
    %543 = vmatpush.msra.mxu0 %v542
    %v544 = vand.u32 %v453, 4294901760
    %545 = vmatmul.f32.gmra.mxu0 %v544
    %v546 = vpop.f32.mrf.mxu0
    %v547 = vadd.f32 %v486, %v546
    %548 = vdwg.mxu0
    %549 = vmatpush.msra.mxu0 0.0
    %550 = vmatpush.msra.mxu0 0.0
    %551 = vmatpush.msra.mxu0 0.0
    %552 = vmatpush.msra.mxu0 0.0
    %553 = vmatpush.msra.mxu0 0.0
    %554 = vmatpush.msra.mxu0 0.0
    %555 = vmatpush.msra.mxu0 0.0
    %556 = vmatpush.msra.mxu0 0.0
    %v557 = vand.u32 %v40, 4294901760
    %v558 = vsub.f32 %v40, %v557
    %559 = vmatpush.msra.mxu0 %v558
    %v560 = vand.u32 %v39, 4294901760
    %v561 = vsub.f32 %v39, %v560
    %562 = vmatpush.msra.mxu0 %v561
    %v563 = vand.u32 %v38, 4294901760
    %v564 = vsub.f32 %v38, %v563
    %565 = vmatpush.msra.mxu0 %v564
    %v566 = vand.u32 %v37, 4294901760
    %v567 = vsub.f32 %v37, %v566
    %568 = vmatpush.msra.mxu0 %v567
    %v569 = vand.u32 %v36, 4294901760
    %v570 = vsub.f32 %v36, %v569
    %571 = vmatpush.msra.mxu0 %v570
    %v572 = vand.u32 %v35, 4294901760
    %v573 = vsub.f32 %v35, %v572
    %574 = vmatpush.msra.mxu0 %v573
    %v575 = vand.u32 %v34, 4294901760
    %v576 = vsub.f32 %v34, %v575
    %577 = vmatpush.msra.mxu0 %v576
    %v578 = vand.u32 %v33, 4294901760
    %v579 = vsub.f32 %v33, %v578
    %580 = vmatpush.msra.mxu0 %v579
    %v581 = vand.u32 %v453, 4294901760
    %v582 = vsub.f32 %v453, %v581
    %583 = vmatmul.f32.gmra.mxu0 %v582
    %v584 = vpop.f32.mrf.mxu0
    %v585 = vadd.f32 %v547, %v584
    %586 = vdwg.mxu0
    %587 = vmatpush.msra.mxu0 0.0
    %588 = vmatpush.msra.mxu0 0.0
    %589 = vmatpush.msra.mxu0 0.0
    %590 = vmatpush.msra.mxu0 0.0
    %591 = vmatpush.msra.mxu0 0.0
    %592 = vmatpush.msra.mxu0 0.0
    %593 = vmatpush.msra.mxu0 0.0
    %594 = vmatpush.msra.mxu0 0.0
    %v595 = vand.u32 %v40, 4294901760
    %596 = vmatpush.msra.mxu0 %v595
    %v597 = vand.u32 %v39, 4294901760
    %598 = vmatpush.msra.mxu0 %v597
    %v599 = vand.u32 %v38, 4294901760
    %600 = vmatpush.msra.mxu0 %v599
    %v601 = vand.u32 %v37, 4294901760
    %602 = vmatpush.msra.mxu0 %v601
    %v603 = vand.u32 %v36, 4294901760
    %604 = vmatpush.msra.mxu0 %v603
    %v605 = vand.u32 %v35, 4294901760
    %606 = vmatpush.msra.mxu0 %v605
    %v607 = vand.u32 %v34, 4294901760
    %608 = vmatpush.msra.mxu0 %v607
    %v609 = vand.u32 %v33, 4294901760
    %610 = vmatpush.msra.mxu0 %v609
    %v611 = vand.u32 %v453, 4294901760
    %v612 = vsub.f32 %v453, %v611
    %v613 = vand.u32 %v612, 4294901760
    %614 = vmatmul.f32.gmra.mxu0 %v613
    %v615 = vpop.f32.mrf.mxu0
    %v616 = vadd.f32 %v585, %v615
    %617 = vdwg.mxu0
    %618 = vmatpush.msra.mxu0 0.0
    %619 = vmatpush.msra.mxu0 0.0
    %620 = vmatpush.msra.mxu0 0.0
    %621 = vmatpush.msra.mxu0 0.0
    %622 = vmatpush.msra.mxu0 0.0
    %623 = vmatpush.msra.mxu0 0.0
    %624 = vmatpush.msra.mxu0 0.0
    %625 = vmatpush.msra.mxu0 0.0
    %v626 = vand.u32 %v40, 4294901760
    %v627 = vsub.f32 %v40, %v626
    %v628 = vand.u32 %v627, 4294901760
    %629 = vmatpush.msra.mxu0 %v628
    %v630 = vand.u32 %v39, 4294901760
    %v631 = vsub.f32 %v39, %v630
    %v632 = vand.u32 %v631, 4294901760
    %633 = vmatpush.msra.mxu0 %v632
    %v634 = vand.u32 %v38, 4294901760
    %v635 = vsub.f32 %v38, %v634
    %v636 = vand.u32 %v635, 4294901760
    %637 = vmatpush.msra.mxu0 %v636
    %v638 = vand.u32 %v37, 4294901760
    %v639 = vsub.f32 %v37, %v638
    %v640 = vand.u32 %v639, 4294901760
    %641 = vmatpush.msra.mxu0 %v640
    %v642 = vand.u32 %v36, 4294901760
    %v643 = vsub.f32 %v36, %v642
    %v644 = vand.u32 %v643, 4294901760
    %645 = vmatpush.msra.mxu0 %v644
    %v646 = vand.u32 %v35, 4294901760
    %v647 = vsub.f32 %v35, %v646
    %v648 = vand.u32 %v647, 4294901760
    %649 = vmatpush.msra.mxu0 %v648
    %v650 = vand.u32 %v34, 4294901760
    %v651 = vsub.f32 %v34, %v650
    %v652 = vand.u32 %v651, 4294901760
    %653 = vmatpush.msra.mxu0 %v652
    %v654 = vand.u32 %v33, 4294901760
    %v655 = vsub.f32 %v33, %v654
    %v656 = vand.u32 %v655, 4294901760
    %657 = vmatpush.msra.mxu0 %v656
    %v658 = vand.u32 %v453, 4294901760
    %659 = vmatmul.f32.gmra.mxu0 %v658
    %v660 = vpop.f32.mrf.mxu0
    %v661 = vadd.f32 %v616, %v660
    %662 = vdwg.mxu0
    %663 = vmatpush.msra.mxu0 0.0
    %664 = vmatpush.msra.mxu0 0.0
    %665 = vmatpush.msra.mxu0 0.0
    %666 = vmatpush.msra.mxu0 0.0
    %667 = vmatpush.msra.mxu0 0.0
    %668 = vmatpush.msra.mxu0 0.0
    %669 = vmatpush.msra.mxu0 0.0
    %670 = vmatpush.msra.mxu0 0.0
    %v671 = vand.u32 %v40, 4294901760
    %672 = vmatpush.msra.mxu0 %v671
    %v673 = vand.u32 %v39, 4294901760
    %674 = vmatpush.msra.mxu0 %v673
    %v675 = vand.u32 %v38, 4294901760
    %676 = vmatpush.msra.mxu0 %v675
    %v677 = vand.u32 %v37, 4294901760
    %678 = vmatpush.msra.mxu0 %v677
    %v679 = vand.u32 %v36, 4294901760
    %680 = vmatpush.msra.mxu0 %v679
    %v681 = vand.u32 %v35, 4294901760
    %682 = vmatpush.msra.mxu0 %v681
    %v683 = vand.u32 %v34, 4294901760
    %684 = vmatpush.msra.mxu0 %v683
    %v685 = vand.u32 %v33, 4294901760
    %686 = vmatpush.msra.mxu0 %v685
    %v687 = vand.u32 %v453, 4294901760
    %688 = vmatmul.f32.gmra.mxu0 %v687
    %v689 = vpop.f32.mrf.mxu0
    %v690 = vadd.f32 %v661, %v689
    %691 = vdwg.mxu0
    %v692 = vadd.f32 %v421, %v690
    %v693 = vtanh.pop %v692
    %v695 = vsel %vm451, %v693, 0
    %697 = vmatpush.msra.mxu0 0.0
    %698 = vmatpush.msra.mxu0 0.0
    %699 = vmatpush.msra.mxu0 0.0
    %700 = vmatpush.msra.mxu0 0.0
    %701 = vmatpush.msra.mxu0 0.0
    %702 = vmatpush.msra.mxu0 0.0
    %703 = vmatpush.msra.mxu0 0.0
    %704 = vmatpush.msra.mxu0 0.0
    %v705 = vand.u32 %v40, 4294901760
    %706 = vmatpush.msra.mxu0 %v705
    %v707 = vand.u32 %v39, 4294901760
    %708 = vmatpush.msra.mxu0 %v707
    %v709 = vand.u32 %v38, 4294901760
    %710 = vmatpush.msra.mxu0 %v709
    %v711 = vand.u32 %v37, 4294901760
    %712 = vmatpush.msra.mxu0 %v711
    %v713 = vand.u32 %v36, 4294901760
    %714 = vmatpush.msra.mxu0 %v713
    %v715 = vand.u32 %v35, 4294901760
    %716 = vmatpush.msra.mxu0 %v715
    %v717 = vand.u32 %v34, 4294901760
    %718 = vmatpush.msra.mxu0 %v717
    %v719 = vand.u32 %v33, 4294901760
    %720 = vmatpush.msra.mxu0 %v719
    %v721 = vand.u32 %v695, 4294901760
    %v722 = vsub.f32 %v695, %v721
    %v723 = vand.u32 %v722, 4294901760
    %v724 = vsub.f32 %v722, %v723
    %v725 = vand.u32 %v724, 4294901760
    %726 = vmatmul.f32.gmra.mxu0 %v725
    %v727 = vpop.f32.mrf.mxu0
    %v728 = vadd.f32 0.0, %v727
    %729 = vdwg.mxu0
    %730 = vmatpush.msra.mxu0 0.0
    %731 = vmatpush.msra.mxu0 0.0
    %732 = vmatpush.msra.mxu0 0.0
    %733 = vmatpush.msra.mxu0 0.0
    %734 = vmatpush.msra.mxu0 0.0
    %735 = vmatpush.msra.mxu0 0.0
    %736 = vmatpush.msra.mxu0 0.0
    %737 = vmatpush.msra.mxu0 0.0
    %v738 = vand.u32 %v40, 4294901760
    %v739 = vsub.f32 %v40, %v738
    %v740 = vand.u32 %v739, 4294901760
    %v741 = vsub.f32 %v739, %v740
    %v742 = vand.u32 %v741, 4294901760
    %743 = vmatpush.msra.mxu0 %v742
    %v744 = vand.u32 %v39, 4294901760
    %v745 = vsub.f32 %v39, %v744
    %v746 = vand.u32 %v745, 4294901760
    %v747 = vsub.f32 %v745, %v746
    %v748 = vand.u32 %v747, 4294901760
    %749 = vmatpush.msra.mxu0 %v748
    %v750 = vand.u32 %v38, 4294901760
    %v751 = vsub.f32 %v38, %v750
    %v752 = vand.u32 %v751, 4294901760
    %v753 = vsub.f32 %v751, %v752
    %v754 = vand.u32 %v753, 4294901760
    %755 = vmatpush.msra.mxu0 %v754
    %v756 = vand.u32 %v37, 4294901760
    %v757 = vsub.f32 %v37, %v756
    %v758 = vand.u32 %v757, 4294901760
    %v759 = vsub.f32 %v757, %v758
    %v760 = vand.u32 %v759, 4294901760
    %761 = vmatpush.msra.mxu0 %v760
    %v762 = vand.u32 %v36, 4294901760
    %v763 = vsub.f32 %v36, %v762
    %v764 = vand.u32 %v763, 4294901760
    %v765 = vsub.f32 %v763, %v764
    %v766 = vand.u32 %v765, 4294901760
    %767 = vmatpush.msra.mxu0 %v766
    %v768 = vand.u32 %v35, 4294901760
    %v769 = vsub.f32 %v35, %v768
    %v770 = vand.u32 %v769, 4294901760
    %v771 = vsub.f32 %v769, %v770
    %v772 = vand.u32 %v771, 4294901760
    %773 = vmatpush.msra.mxu0 %v772
    %v774 = vand.u32 %v34, 4294901760
    %v775 = vsub.f32 %v34, %v774
    %v776 = vand.u32 %v775, 4294901760
    %v777 = vsub.f32 %v775, %v776
    %v778 = vand.u32 %v777, 4294901760
    %779 = vmatpush.msra.mxu0 %v778
    %v780 = vand.u32 %v33, 4294901760
    %v781 = vsub.f32 %v33, %v780
    %v782 = vand.u32 %v781, 4294901760
    %v783 = vsub.f32 %v781, %v782
    %v784 = vand.u32 %v783, 4294901760
    %785 = vmatpush.msra.mxu0 %v784
    %v786 = vand.u32 %v695, 4294901760
    %787 = vmatmul.f32.gmra.mxu0 %v786
    %v788 = vpop.f32.mrf.mxu0
    %v789 = vadd.f32 %v728, %v788
    %790 = vdwg.mxu0
    %791 = vmatpush.msra.mxu0 0.0
    %792 = vmatpush.msra.mxu0 0.0
    %793 = vmatpush.msra.mxu0 0.0
    %794 = vmatpush.msra.mxu0 0.0
    %795 = vmatpush.msra.mxu0 0.0
    %796 = vmatpush.msra.mxu0 0.0
    %797 = vmatpush.msra.mxu0 0.0
    %798 = vmatpush.msra.mxu0 0.0
    %v799 = vand.u32 %v40, 4294901760
    %v800 = vsub.f32 %v40, %v799
    %801 = vmatpush.msra.mxu0 %v800
    %v802 = vand.u32 %v39, 4294901760
    %v803 = vsub.f32 %v39, %v802
    %804 = vmatpush.msra.mxu0 %v803
    %v805 = vand.u32 %v38, 4294901760
    %v806 = vsub.f32 %v38, %v805
    %807 = vmatpush.msra.mxu0 %v806
    %v808 = vand.u32 %v37, 4294901760
    %v809 = vsub.f32 %v37, %v808
    %810 = vmatpush.msra.mxu0 %v809
    %v811 = vand.u32 %v36, 4294901760
    %v812 = vsub.f32 %v36, %v811
    %813 = vmatpush.msra.mxu0 %v812
    %v814 = vand.u32 %v35, 4294901760
    %v815 = vsub.f32 %v35, %v814
    %816 = vmatpush.msra.mxu0 %v815
    %v817 = vand.u32 %v34, 4294901760
    %v818 = vsub.f32 %v34, %v817
    %819 = vmatpush.msra.mxu0 %v818
    %v820 = vand.u32 %v33, 4294901760
    %v821 = vsub.f32 %v33, %v820
    %822 = vmatpush.msra.mxu0 %v821
    %v823 = vand.u32 %v695, 4294901760
    %v824 = vsub.f32 %v695, %v823
    %825 = vmatmul.f32.gmra.mxu0 %v824
    %v826 = vpop.f32.mrf.mxu0
    %v827 = vadd.f32 %v789, %v826
    %828 = vdwg.mxu0
    %829 = vmatpush.msra.mxu0 0.0
    %830 = vmatpush.msra.mxu0 0.0
    %831 = vmatpush.msra.mxu0 0.0
    %832 = vmatpush.msra.mxu0 0.0
    %833 = vmatpush.msra.mxu0 0.0
    %834 = vmatpush.msra.mxu0 0.0
    %835 = vmatpush.msra.mxu0 0.0
    %836 = vmatpush.msra.mxu0 0.0
    %v837 = vand.u32 %v40, 4294901760
    %838 = vmatpush.msra.mxu0 %v837
    %v839 = vand.u32 %v39, 4294901760
    %840 = vmatpush.msra.mxu0 %v839
    %v841 = vand.u32 %v38, 4294901760
    %842 = vmatpush.msra.mxu0 %v841
    %v843 = vand.u32 %v37, 4294901760
    %844 = vmatpush.msra.mxu0 %v843
    %v845 = vand.u32 %v36, 4294901760
    %846 = vmatpush.msra.mxu0 %v845
    %v847 = vand.u32 %v35, 4294901760
    %848 = vmatpush.msra.mxu0 %v847
    %v849 = vand.u32 %v34, 4294901760
    %850 = vmatpush.msra.mxu0 %v849
    %v851 = vand.u32 %v33, 4294901760
    %852 = vmatpush.msra.mxu0 %v851
    %v853 = vand.u32 %v695, 4294901760
    %v854 = vsub.f32 %v695, %v853
    %v855 = vand.u32 %v854, 4294901760
    %856 = vmatmul.f32.gmra.mxu0 %v855
    %v857 = vpop.f32.mrf.mxu0
    %v858 = vadd.f32 %v827, %v857
    %859 = vdwg.mxu0
    %860 = vmatpush.msra.mxu0 0.0
    %861 = vmatpush.msra.mxu0 0.0
    %862 = vmatpush.msra.mxu0 0.0
    %863 = vmatpush.msra.mxu0 0.0
    %864 = vmatpush.msra.mxu0 0.0
    %865 = vmatpush.msra.mxu0 0.0
    %866 = vmatpush.msra.mxu0 0.0
    %867 = vmatpush.msra.mxu0 0.0
    %v868 = vand.u32 %v40, 4294901760
    %v869 = vsub.f32 %v40, %v868
    %v870 = vand.u32 %v869, 4294901760
    %871 = vmatpush.msra.mxu0 %v870
    %v872 = vand.u32 %v39, 4294901760
    %v873 = vsub.f32 %v39, %v872
    %v874 = vand.u32 %v873, 4294901760
    %875 = vmatpush.msra.mxu0 %v874
    %v876 = vand.u32 %v38, 4294901760
    %v877 = vsub.f32 %v38, %v876
    %v878 = vand.u32 %v877, 4294901760
    %879 = vmatpush.msra.mxu0 %v878
    %v880 = vand.u32 %v37, 4294901760
    %v881 = vsub.f32 %v37, %v880
    %v882 = vand.u32 %v881, 4294901760
    %883 = vmatpush.msra.mxu0 %v882
    %v884 = vand.u32 %v36, 4294901760
    %v885 = vsub.f32 %v36, %v884
    %v886 = vand.u32 %v885, 4294901760
    %887 = vmatpush.msra.mxu0 %v886
    %v888 = vand.u32 %v35, 4294901760
    %v889 = vsub.f32 %v35, %v888
    %v890 = vand.u32 %v889, 4294901760
    %891 = vmatpush.msra.mxu0 %v890
    %v892 = vand.u32 %v34, 4294901760
    %v893 = vsub.f32 %v34, %v892
    %v894 = vand.u32 %v893, 4294901760
    %895 = vmatpush.msra.mxu0 %v894
    %v896 = vand.u32 %v33, 4294901760
    %v897 = vsub.f32 %v33, %v896
    %v898 = vand.u32 %v897, 4294901760
    %899 = vmatpush.msra.mxu0 %v898
    %v900 = vand.u32 %v695, 4294901760
    %901 = vmatmul.f32.gmra.mxu0 %v900
    %v902 = vpop.f32.mrf.mxu0
    %v903 = vadd.f32 %v858, %v902
    %904 = vdwg.mxu0
    %905 = vmatpush.msra.mxu0 0.0
    %906 = vmatpush.msra.mxu0 0.0
    %907 = vmatpush.msra.mxu0 0.0
    %908 = vmatpush.msra.mxu0 0.0
    %909 = vmatpush.msra.mxu0 0.0
    %910 = vmatpush.msra.mxu0 0.0
    %911 = vmatpush.msra.mxu0 0.0
    %912 = vmatpush.msra.mxu0 0.0
    %v913 = vand.u32 %v40, 4294901760
    %914 = vmatpush.msra.mxu0 %v913
    %v915 = vand.u32 %v39, 4294901760
    %916 = vmatpush.msra.mxu0 %v915
    %v917 = vand.u32 %v38, 4294901760
    %918 = vmatpush.msra.mxu0 %v917
    %v919 = vand.u32 %v37, 4294901760
    %920 = vmatpush.msra.mxu0 %v919
    %v921 = vand.u32 %v36, 4294901760
    %922 = vmatpush.msra.mxu0 %v921
    %v923 = vand.u32 %v35, 4294901760
    %924 = vmatpush.msra.mxu0 %v923
    %v925 = vand.u32 %v34, 4294901760
    %926 = vmatpush.msra.mxu0 %v925
    %v927 = vand.u32 %v33, 4294901760
    %928 = vmatpush.msra.mxu0 %v927
    %v929 = vand.u32 %v695, 4294901760
    %930 = vmatmul.f32.gmra.mxu0 %v929
    %v931 = vpop.f32.mrf.mxu0
    %v932 = vadd.f32 %v903, %v931
    %933 = vdwg.mxu0
    %v934 = vadd.f32 %v425, %v932
    %v935 = vtanh.pop %v934
    %v937 = vsel %vm451, %v935, 0
    %939 = vmatpush.msra.mxu0 0.0
    %940 = vmatpush.msra.mxu0 0.0
    %941 = vmatpush.msra.mxu0 0.0
    %942 = vmatpush.msra.mxu0 0.0
    %943 = vmatpush.msra.mxu0 0.0
    %944 = vmatpush.msra.mxu0 0.0
    %945 = vmatpush.msra.mxu0 0.0
    %946 = vmatpush.msra.mxu0 0.0
    %v947 = vand.u32 %v40, 4294901760
    %948 = vmatpush.msra.mxu0 %v947
    %v949 = vand.u32 %v39, 4294901760
    %950 = vmatpush.msra.mxu0 %v949
    %v951 = vand.u32 %v38, 4294901760
    %952 = vmatpush.msra.mxu0 %v951
    %v953 = vand.u32 %v37, 4294901760
    %954 = vmatpush.msra.mxu0 %v953
    %v955 = vand.u32 %v36, 4294901760
    %956 = vmatpush.msra.mxu0 %v955
    %v957 = vand.u32 %v35, 4294901760
    %958 = vmatpush.msra.mxu0 %v957
    %v959 = vand.u32 %v34, 4294901760
    %960 = vmatpush.msra.mxu0 %v959
    %v961 = vand.u32 %v33, 4294901760
    %962 = vmatpush.msra.mxu0 %v961
    %v963 = vand.u32 %v937, 4294901760
    %v964 = vsub.f32 %v937, %v963
    %v965 = vand.u32 %v964, 4294901760
    %v966 = vsub.f32 %v964, %v965
    %v967 = vand.u32 %v966, 4294901760
    %968 = vmatmul.f32.gmra.mxu0 %v967
    %v969 = vpop.f32.mrf.mxu0
    %v970 = vadd.f32 0.0, %v969
    %971 = vdwg.mxu0
    %972 = vmatpush.msra.mxu0 0.0
    %973 = vmatpush.msra.mxu0 0.0
    %974 = vmatpush.msra.mxu0 0.0
    %975 = vmatpush.msra.mxu0 0.0
    %976 = vmatpush.msra.mxu0 0.0
    %977 = vmatpush.msra.mxu0 0.0
    %978 = vmatpush.msra.mxu0 0.0
    %979 = vmatpush.msra.mxu0 0.0
    %v980 = vand.u32 %v40, 4294901760
    %v981 = vsub.f32 %v40, %v980
    %v982 = vand.u32 %v981, 4294901760
    %v983 = vsub.f32 %v981, %v982
    %v984 = vand.u32 %v983, 4294901760
    %985 = vmatpush.msra.mxu0 %v984
    %v986 = vand.u32 %v39, 4294901760
    %v987 = vsub.f32 %v39, %v986
    %v988 = vand.u32 %v987, 4294901760
    %v989 = vsub.f32 %v987, %v988
    %v990 = vand.u32 %v989, 4294901760
    %991 = vmatpush.msra.mxu0 %v990
    %v992 = vand.u32 %v38, 4294901760
    %v993 = vsub.f32 %v38, %v992
    %v994 = vand.u32 %v993, 4294901760
    %v995 = vsub.f32 %v993, %v994
    %v996 = vand.u32 %v995, 4294901760
    %997 = vmatpush.msra.mxu0 %v996
    %v998 = vand.u32 %v37, 4294901760
    %v999 = vsub.f32 %v37, %v998
    %v1000 = vand.u32 %v999, 4294901760
    %v1001 = vsub.f32 %v999, %v1000
    %v1002 = vand.u32 %v1001, 4294901760
    %1003 = vmatpush.msra.mxu0 %v1002
    %v1004 = vand.u32 %v36, 4294901760
    %v1005 = vsub.f32 %v36, %v1004
    %v1006 = vand.u32 %v1005, 4294901760
    %v1007 = vsub.f32 %v1005, %v1006
    %v1008 = vand.u32 %v1007, 4294901760
    %1009 = vmatpush.msra.mxu0 %v1008
    %v1010 = vand.u32 %v35, 4294901760
    %v1011 = vsub.f32 %v35, %v1010
    %v1012 = vand.u32 %v1011, 4294901760
    %v1013 = vsub.f32 %v1011, %v1012
    %v1014 = vand.u32 %v1013, 4294901760
    %1015 = vmatpush.msra.mxu0 %v1014
    %v1016 = vand.u32 %v34, 4294901760
    %v1017 = vsub.f32 %v34, %v1016
    %v1018 = vand.u32 %v1017, 4294901760
    %v1019 = vsub.f32 %v1017, %v1018
    %v1020 = vand.u32 %v1019, 4294901760
    %1021 = vmatpush.msra.mxu0 %v1020
    %v1022 = vand.u32 %v33, 4294901760
    %v1023 = vsub.f32 %v33, %v1022
    %v1024 = vand.u32 %v1023, 4294901760
    %v1025 = vsub.f32 %v1023, %v1024
    %v1026 = vand.u32 %v1025, 4294901760
    %1027 = vmatpush.msra.mxu0 %v1026
    %v1028 = vand.u32 %v937, 4294901760
    %1029 = vmatmul.f32.gmra.mxu0 %v1028
    %v1030 = vpop.f32.mrf.mxu0
    %v1031 = vadd.f32 %v970, %v1030
    %1032 = vdwg.mxu0
    %1033 = vmatpush.msra.mxu0 0.0
    %1034 = vmatpush.msra.mxu0 0.0
    %1035 = vmatpush.msra.mxu0 0.0
    %1036 = vmatpush.msra.mxu0 0.0
    %1037 = vmatpush.msra.mxu0 0.0
    %1038 = vmatpush.msra.mxu0 0.0
    %1039 = vmatpush.msra.mxu0 0.0
    %1040 = vmatpush.msra.mxu0 0.0
    %v1041 = vand.u32 %v40, 4294901760
    %v1042 = vsub.f32 %v40, %v1041
    %1043 = vmatpush.msra.mxu0 %v1042
    %v1044 = vand.u32 %v39, 4294901760
    %v1045 = vsub.f32 %v39, %v1044
    %1046 = vmatpush.msra.mxu0 %v1045
    %v1047 = vand.u32 %v38, 4294901760
    %v1048 = vsub.f32 %v38, %v1047
    %1049 = vmatpush.msra.mxu0 %v1048
    %v1050 = vand.u32 %v37, 4294901760
    %v1051 = vsub.f32 %v37, %v1050
    %1052 = vmatpush.msra.mxu0 %v1051
    %v1053 = vand.u32 %v36, 4294901760
    %v1054 = vsub.f32 %v36, %v1053
    %1055 = vmatpush.msra.mxu0 %v1054
    %v1056 = vand.u32 %v35, 4294901760
    %v1057 = vsub.f32 %v35, %v1056
    %1058 = vmatpush.msra.mxu0 %v1057
    %v1059 = vand.u32 %v34, 4294901760
    %v1060 = vsub.f32 %v34, %v1059
    %1061 = vmatpush.msra.mxu0 %v1060
    %v1062 = vand.u32 %v33, 4294901760
    %v1063 = vsub.f32 %v33, %v1062
    %1064 = vmatpush.msra.mxu0 %v1063
    %v1065 = vand.u32 %v937, 4294901760
    %v1066 = vsub.f32 %v937, %v1065
    %1067 = vmatmul.f32.gmra.mxu0 %v1066
    %v1068 = vpop.f32.mrf.mxu0
    %v1069 = vadd.f32 %v1031, %v1068
    %1070 = vdwg.mxu0
    %1071 = vmatpush.msra.mxu0 0.0
    %1072 = vmatpush.msra.mxu0 0.0
    %1073 = vmatpush.msra.mxu0 0.0
    %1074 = vmatpush.msra.mxu0 0.0
    %1075 = vmatpush.msra.mxu0 0.0
    %1076 = vmatpush.msra.mxu0 0.0
    %1077 = vmatpush.msra.mxu0 0.0
    %1078 = vmatpush.msra.mxu0 0.0
    %v1079 = vand.u32 %v40, 4294901760
    %1080 = vmatpush.msra.mxu0 %v1079
    %v1081 = vand.u32 %v39, 4294901760
    %1082 = vmatpush.msra.mxu0 %v1081
    %v1083 = vand.u32 %v38, 4294901760
    %1084 = vmatpush.msra.mxu0 %v1083
    %v1085 = vand.u32 %v37, 4294901760
    %1086 = vmatpush.msra.mxu0 %v1085
    %v1087 = vand.u32 %v36, 4294901760
    %1088 = vmatpush.msra.mxu0 %v1087
    %v1089 = vand.u32 %v35, 4294901760
    %1090 = vmatpush.msra.mxu0 %v1089
    %v1091 = vand.u32 %v34, 4294901760
    %1092 = vmatpush.msra.mxu0 %v1091
    %v1093 = vand.u32 %v33, 4294901760
    %1094 = vmatpush.msra.mxu0 %v1093
    %v1095 = vand.u32 %v937, 4294901760
    %v1096 = vsub.f32 %v937, %v1095
    %v1097 = vand.u32 %v1096, 4294901760
    %1098 = vmatmul.f32.gmra.mxu0 %v1097
    %v1099 = vpop.f32.mrf.mxu0
    %v1100 = vadd.f32 %v1069, %v1099
    %1101 = vdwg.mxu0
    %1102 = vmatpush.msra.mxu0 0.0
    %1103 = vmatpush.msra.mxu0 0.0
    %1104 = vmatpush.msra.mxu0 0.0
    %1105 = vmatpush.msra.mxu0 0.0
    %1106 = vmatpush.msra.mxu0 0.0
    %1107 = vmatpush.msra.mxu0 0.0
    %1108 = vmatpush.msra.mxu0 0.0
    %1109 = vmatpush.msra.mxu0 0.0
    %v1110 = vand.u32 %v40, 4294901760
    %v1111 = vsub.f32 %v40, %v1110
    %v1112 = vand.u32 %v1111, 4294901760
    %1113 = vmatpush.msra.mxu0 %v1112
    %v1114 = vand.u32 %v39, 4294901760
    %v1115 = vsub.f32 %v39, %v1114
    %v1116 = vand.u32 %v1115, 4294901760
    %1117 = vmatpush.msra.mxu0 %v1116
    %v1118 = vand.u32 %v38, 4294901760
    %v1119 = vsub.f32 %v38, %v1118
    %v1120 = vand.u32 %v1119, 4294901760
    %1121 = vmatpush.msra.mxu0 %v1120
    %v1122 = vand.u32 %v37, 4294901760
    %v1123 = vsub.f32 %v37, %v1122
    %v1124 = vand.u32 %v1123, 4294901760
    %1125 = vmatpush.msra.mxu0 %v1124
    %v1126 = vand.u32 %v36, 4294901760
    %v1127 = vsub.f32 %v36, %v1126
    %v1128 = vand.u32 %v1127, 4294901760
    %1129 = vmatpush.msra.mxu0 %v1128
    %v1130 = vand.u32 %v35, 4294901760
    %v1131 = vsub.f32 %v35, %v1130
    %v1132 = vand.u32 %v1131, 4294901760
    %1133 = vmatpush.msra.mxu0 %v1132
    %v1134 = vand.u32 %v34, 4294901760
    %v1135 = vsub.f32 %v34, %v1134
    %v1136 = vand.u32 %v1135, 4294901760
    %1137 = vmatpush.msra.mxu0 %v1136
    %v1138 = vand.u32 %v33, 4294901760
    %v1139 = vsub.f32 %v33, %v1138
    %v1140 = vand.u32 %v1139, 4294901760
    %1141 = vmatpush.msra.mxu0 %v1140
    %v1142 = vand.u32 %v937, 4294901760
    %1143 = vmatmul.f32.gmra.mxu0 %v1142
    %v1144 = vpop.f32.mrf.mxu0
    %v1145 = vadd.f32 %v1100, %v1144
    %1146 = vdwg.mxu0
    %1147 = vmatpush.msra.mxu0 0.0
    %1148 = vmatpush.msra.mxu0 0.0
    %1149 = vmatpush.msra.mxu0 0.0
    %1150 = vmatpush.msra.mxu0 0.0
    %1151 = vmatpush.msra.mxu0 0.0
    %1152 = vmatpush.msra.mxu0 0.0
    %1153 = vmatpush.msra.mxu0 0.0
    %1154 = vmatpush.msra.mxu0 0.0
    %v1155 = vand.u32 %v40, 4294901760
    %1156 = vmatpush.msra.mxu0 %v1155
    %v1157 = vand.u32 %v39, 4294901760
    %1158 = vmatpush.msra.mxu0 %v1157
    %v1159 = vand.u32 %v38, 4294901760
    %1160 = vmatpush.msra.mxu0 %v1159
    %v1161 = vand.u32 %v37, 4294901760
    %1162 = vmatpush.msra.mxu0 %v1161
    %v1163 = vand.u32 %v36, 4294901760
    %1164 = vmatpush.msra.mxu0 %v1163
    %v1165 = vand.u32 %v35, 4294901760
    %1166 = vmatpush.msra.mxu0 %v1165
    %v1167 = vand.u32 %v34, 4294901760
    %1168 = vmatpush.msra.mxu0 %v1167
    %v1169 = vand.u32 %v33, 4294901760
    %1170 = vmatpush.msra.mxu0 %v1169
    %v1171 = vand.u32 %v937, 4294901760
    %1172 = vmatmul.f32.gmra.mxu0 %v1171
    %v1173 = vpop.f32.mrf.mxu0
    %v1174 = vadd.f32 %v1145, %v1173
    %1175 = vdwg.mxu0
    %v1176 = vadd.f32 %v429, %v1174
    %v1177 = vtanh.pop %v1176
    %v1179 = vsel %vm451, %v1177, 0
    %1181 = vmatpush.msra.mxu0 0.0
    %1182 = vmatpush.msra.mxu0 0.0
    %1183 = vmatpush.msra.mxu0 0.0
    %1184 = vmatpush.msra.mxu0 0.0
    %1185 = vmatpush.msra.mxu0 0.0
    %1186 = vmatpush.msra.mxu0 0.0
    %1187 = vmatpush.msra.mxu0 0.0
    %1188 = vmatpush.msra.mxu0 0.0
    %v1189 = vand.u32 %v40, 4294901760
    %1190 = vmatpush.msra.mxu0 %v1189
    %v1191 = vand.u32 %v39, 4294901760
    %1192 = vmatpush.msra.mxu0 %v1191
    %v1193 = vand.u32 %v38, 4294901760
    %1194 = vmatpush.msra.mxu0 %v1193
    %v1195 = vand.u32 %v37, 4294901760
    %1196 = vmatpush.msra.mxu0 %v1195
    %v1197 = vand.u32 %v36, 4294901760
    %1198 = vmatpush.msra.mxu0 %v1197
    %v1199 = vand.u32 %v35, 4294901760
    %1200 = vmatpush.msra.mxu0 %v1199
    %v1201 = vand.u32 %v34, 4294901760
    %1202 = vmatpush.msra.mxu0 %v1201
    %v1203 = vand.u32 %v33, 4294901760
    %1204 = vmatpush.msra.mxu0 %v1203
    %v1205 = vand.u32 %v1179, 4294901760
    %v1206 = vsub.f32 %v1179, %v1205
    %v1207 = vand.u32 %v1206, 4294901760
    %v1208 = vsub.f32 %v1206, %v1207
    %v1209 = vand.u32 %v1208, 4294901760
    %1210 = vmatmul.f32.gmra.mxu0 %v1209
    %v1211 = vpop.f32.mrf.mxu0
    %v1212 = vadd.f32 0.0, %v1211
    %1213 = vdwg.mxu0
    %1214 = vmatpush.msra.mxu0 0.0
    %1215 = vmatpush.msra.mxu0 0.0
    %1216 = vmatpush.msra.mxu0 0.0
    %1217 = vmatpush.msra.mxu0 0.0
    %1218 = vmatpush.msra.mxu0 0.0
    %1219 = vmatpush.msra.mxu0 0.0
    %1220 = vmatpush.msra.mxu0 0.0
    %1221 = vmatpush.msra.mxu0 0.0
    %v1222 = vand.u32 %v40, 4294901760
    %v1223 = vsub.f32 %v40, %v1222
    %v1224 = vand.u32 %v1223, 4294901760
    %v1225 = vsub.f32 %v1223, %v1224
    %v1226 = vand.u32 %v1225, 4294901760
    %1227 = vmatpush.msra.mxu0 %v1226
    %v1228 = vand.u32 %v39, 4294901760
    %v1229 = vsub.f32 %v39, %v1228
    %v1230 = vand.u32 %v1229, 4294901760
    %v1231 = vsub.f32 %v1229, %v1230
    %v1232 = vand.u32 %v1231, 4294901760
    %1233 = vmatpush.msra.mxu0 %v1232
    %v1234 = vand.u32 %v38, 4294901760
    %v1235 = vsub.f32 %v38, %v1234
    %v1236 = vand.u32 %v1235, 4294901760
    %v1237 = vsub.f32 %v1235, %v1236
    %v1238 = vand.u32 %v1237, 4294901760
    %1239 = vmatpush.msra.mxu0 %v1238
    %v1240 = vand.u32 %v37, 4294901760
    %v1241 = vsub.f32 %v37, %v1240
    %v1242 = vand.u32 %v1241, 4294901760
    %v1243 = vsub.f32 %v1241, %v1242
    %v1244 = vand.u32 %v1243, 4294901760
    %1245 = vmatpush.msra.mxu0 %v1244
    %v1246 = vand.u32 %v36, 4294901760
    %v1247 = vsub.f32 %v36, %v1246
    %v1248 = vand.u32 %v1247, 4294901760
    %v1249 = vsub.f32 %v1247, %v1248
    %v1250 = vand.u32 %v1249, 4294901760
    %1251 = vmatpush.msra.mxu0 %v1250
    %v1252 = vand.u32 %v35, 4294901760
    %v1253 = vsub.f32 %v35, %v1252
    %v1254 = vand.u32 %v1253, 4294901760
    %v1255 = vsub.f32 %v1253, %v1254
    %v1256 = vand.u32 %v1255, 4294901760
    %1257 = vmatpush.msra.mxu0 %v1256
    %v1258 = vand.u32 %v34, 4294901760
    %v1259 = vsub.f32 %v34, %v1258
    %v1260 = vand.u32 %v1259, 4294901760
    %v1261 = vsub.f32 %v1259, %v1260
    %v1262 = vand.u32 %v1261, 4294901760
    %1263 = vmatpush.msra.mxu0 %v1262
    %v1264 = vand.u32 %v33, 4294901760
    %v1265 = vsub.f32 %v33, %v1264
    %v1266 = vand.u32 %v1265, 4294901760
    %v1267 = vsub.f32 %v1265, %v1266
    %v1268 = vand.u32 %v1267, 4294901760
    %1269 = vmatpush.msra.mxu0 %v1268
    %v1270 = vand.u32 %v1179, 4294901760
    %1271 = vmatmul.f32.gmra.mxu0 %v1270
    %v1272 = vpop.f32.mrf.mxu0
    %v1273 = vadd.f32 %v1212, %v1272
    %1274 = vdwg.mxu0
    %1275 = vmatpush.msra.mxu0 0.0
    %1276 = vmatpush.msra.mxu0 0.0
    %1277 = vmatpush.msra.mxu0 0.0
    %1278 = vmatpush.msra.mxu0 0.0
    %1279 = vmatpush.msra.mxu0 0.0
    %1280 = vmatpush.msra.mxu0 0.0
    %1281 = vmatpush.msra.mxu0 0.0
    %1282 = vmatpush.msra.mxu0 0.0
    %v1283 = vand.u32 %v40, 4294901760
    %v1284 = vsub.f32 %v40, %v1283
    %1285 = vmatpush.msra.mxu0 %v1284
    %v1286 = vand.u32 %v39, 4294901760
    %v1287 = vsub.f32 %v39, %v1286
    %1288 = vmatpush.msra.mxu0 %v1287
    %v1289 = vand.u32 %v38, 4294901760
    %v1290 = vsub.f32 %v38, %v1289
    %1291 = vmatpush.msra.mxu0 %v1290
    %v1292 = vand.u32 %v37, 4294901760
    %v1293 = vsub.f32 %v37, %v1292
    %1294 = vmatpush.msra.mxu0 %v1293
    %v1295 = vand.u32 %v36, 4294901760
    %v1296 = vsub.f32 %v36, %v1295
    %1297 = vmatpush.msra.mxu0 %v1296
    %v1298 = vand.u32 %v35, 4294901760
    %v1299 = vsub.f32 %v35, %v1298
    %1300 = vmatpush.msra.mxu0 %v1299
    %v1301 = vand.u32 %v34, 4294901760
    %v1302 = vsub.f32 %v34, %v1301
    %1303 = vmatpush.msra.mxu0 %v1302
    %v1304 = vand.u32 %v33, 4294901760
    %v1305 = vsub.f32 %v33, %v1304
    %1306 = vmatpush.msra.mxu0 %v1305
    %v1307 = vand.u32 %v1179, 4294901760
    %v1308 = vsub.f32 %v1179, %v1307
    %1309 = vmatmul.f32.gmra.mxu0 %v1308
    %v1310 = vpop.f32.mrf.mxu0
    %v1311 = vadd.f32 %v1273, %v1310
    %1312 = vdwg.mxu0
    %1313 = vmatpush.msra.mxu0 0.0
    %1314 = vmatpush.msra.mxu0 0.0
    %1315 = vmatpush.msra.mxu0 0.0
    %1316 = vmatpush.msra.mxu0 0.0
    %1317 = vmatpush.msra.mxu0 0.0
    %1318 = vmatpush.msra.mxu0 0.0
    %1319 = vmatpush.msra.mxu0 0.0
    %1320 = vmatpush.msra.mxu0 0.0
    %v1321 = vand.u32 %v40, 4294901760
    %1322 = vmatpush.msra.mxu0 %v1321
    %v1323 = vand.u32 %v39, 4294901760
    %1324 = vmatpush.msra.mxu0 %v1323
    %v1325 = vand.u32 %v38, 4294901760
    %1326 = vmatpush.msra.mxu0 %v1325
    %v1327 = vand.u32 %v37, 4294901760
    %1328 = vmatpush.msra.mxu0 %v1327
    %v1329 = vand.u32 %v36, 4294901760
    %1330 = vmatpush.msra.mxu0 %v1329
    %v1331 = vand.u32 %v35, 4294901760
    %1332 = vmatpush.msra.mxu0 %v1331
    %v1333 = vand.u32 %v34, 4294901760
    %1334 = vmatpush.msra.mxu0 %v1333
    %v1335 = vand.u32 %v33, 4294901760
    %1336 = vmatpush.msra.mxu0 %v1335
    %v1337 = vand.u32 %v1179, 4294901760
    %v1338 = vsub.f32 %v1179, %v1337
    %v1339 = vand.u32 %v1338, 4294901760
    %1340 = vmatmul.f32.gmra.mxu0 %v1339
    %v1341 = vpop.f32.mrf.mxu0
    %v1342 = vadd.f32 %v1311, %v1341
    %1343 = vdwg.mxu0
    %1344 = vmatpush.msra.mxu0 0.0
    %1345 = vmatpush.msra.mxu0 0.0
    %1346 = vmatpush.msra.mxu0 0.0
    %1347 = vmatpush.msra.mxu0 0.0
    %1348 = vmatpush.msra.mxu0 0.0
    %1349 = vmatpush.msra.mxu0 0.0
    %1350 = vmatpush.msra.mxu0 0.0
    %1351 = vmatpush.msra.mxu0 0.0
    %v1352 = vand.u32 %v40, 4294901760
    %v1353 = vsub.f32 %v40, %v1352
    %v1354 = vand.u32 %v1353, 4294901760
    %1355 = vmatpush.msra.mxu0 %v1354
    %v1356 = vand.u32 %v39, 4294901760
    %v1357 = vsub.f32 %v39, %v1356
    %v1358 = vand.u32 %v1357, 4294901760
    %1359 = vmatpush.msra.mxu0 %v1358
    %v1360 = vand.u32 %v38, 4294901760
    %v1361 = vsub.f32 %v38, %v1360
    %v1362 = vand.u32 %v1361, 4294901760
    %1363 = vmatpush.msra.mxu0 %v1362
    %v1364 = vand.u32 %v37, 4294901760
    %v1365 = vsub.f32 %v37, %v1364
    %v1366 = vand.u32 %v1365, 4294901760
    %1367 = vmatpush.msra.mxu0 %v1366
    %v1368 = vand.u32 %v36, 4294901760
    %v1369 = vsub.f32 %v36, %v1368
    %v1370 = vand.u32 %v1369, 4294901760
    %1371 = vmatpush.msra.mxu0 %v1370
    %v1372 = vand.u32 %v35, 4294901760
    %v1373 = vsub.f32 %v35, %v1372
    %v1374 = vand.u32 %v1373, 4294901760
    %1375 = vmatpush.msra.mxu0 %v1374
    %v1376 = vand.u32 %v34, 4294901760
    %v1377 = vsub.f32 %v34, %v1376
    %v1378 = vand.u32 %v1377, 4294901760
    %1379 = vmatpush.msra.mxu0 %v1378
    %v1380 = vand.u32 %v33, 4294901760
    %v1381 = vsub.f32 %v33, %v1380
    %v1382 = vand.u32 %v1381, 4294901760
    %1383 = vmatpush.msra.mxu0 %v1382
    %v1384 = vand.u32 %v1179, 4294901760
    %1385 = vmatmul.f32.gmra.mxu0 %v1384
    %v1386 = vpop.f32.mrf.mxu0
    %v1387 = vadd.f32 %v1342, %v1386
    %1388 = vdwg.mxu0
    %1389 = vmatpush.msra.mxu0 0.0
    %1390 = vmatpush.msra.mxu0 0.0
    %1391 = vmatpush.msra.mxu0 0.0
    %1392 = vmatpush.msra.mxu0 0.0
    %1393 = vmatpush.msra.mxu0 0.0
    %1394 = vmatpush.msra.mxu0 0.0
    %1395 = vmatpush.msra.mxu0 0.0
    %1396 = vmatpush.msra.mxu0 0.0
    %v1397 = vand.u32 %v40, 4294901760
    %1398 = vmatpush.msra.mxu0 %v1397
    %v1399 = vand.u32 %v39, 4294901760
    %1400 = vmatpush.msra.mxu0 %v1399
    %v1401 = vand.u32 %v38, 4294901760
    %1402 = vmatpush.msra.mxu0 %v1401
    %v1403 = vand.u32 %v37, 4294901760
    %1404 = vmatpush.msra.mxu0 %v1403
    %v1405 = vand.u32 %v36, 4294901760
    %1406 = vmatpush.msra.mxu0 %v1405
    %v1407 = vand.u32 %v35, 4294901760
    %1408 = vmatpush.msra.mxu0 %v1407
    %v1409 = vand.u32 %v34, 4294901760
    %1410 = vmatpush.msra.mxu0 %v1409
    %v1411 = vand.u32 %v33, 4294901760
    %1412 = vmatpush.msra.mxu0 %v1411
    %v1413 = vand.u32 %v1179, 4294901760
    %1414 = vmatmul.f32.gmra.mxu0 %v1413
    %v1415 = vpop.f32.mrf.mxu0
    %v1416 = vadd.f32 %v1387, %v1415
    %1417 = vdwg.mxu0
    %v1418 = vadd.f32 %v433, %v1416
    %v1419 = vtanh.pop %v1418
    %v1421 = vsel %vm451, %v1419, 0
    %1423 = vmatpush.msra.mxu0 0.0
    %1424 = vmatpush.msra.mxu0 0.0
    %1425 = vmatpush.msra.mxu0 0.0
    %1426 = vmatpush.msra.mxu0 0.0
    %1427 = vmatpush.msra.mxu0 0.0
    %1428 = vmatpush.msra.mxu0 0.0
    %1429 = vmatpush.msra.mxu0 0.0
    %1430 = vmatpush.msra.mxu0 0.0
    %v1431 = vand.u32 %v40, 4294901760
    %1432 = vmatpush.msra.mxu0 %v1431
    %v1433 = vand.u32 %v39, 4294901760
    %1434 = vmatpush.msra.mxu0 %v1433
    %v1435 = vand.u32 %v38, 4294901760
    %1436 = vmatpush.msra.mxu0 %v1435
    %v1437 = vand.u32 %v37, 4294901760
    %1438 = vmatpush.msra.mxu0 %v1437
    %v1439 = vand.u32 %v36, 4294901760
    %1440 = vmatpush.msra.mxu0 %v1439
    %v1441 = vand.u32 %v35, 4294901760
    %1442 = vmatpush.msra.mxu0 %v1441
    %v1443 = vand.u32 %v34, 4294901760
    %1444 = vmatpush.msra.mxu0 %v1443
    %v1445 = vand.u32 %v33, 4294901760
    %1446 = vmatpush.msra.mxu0 %v1445
    %v1447 = vand.u32 %v1421, 4294901760
    %v1448 = vsub.f32 %v1421, %v1447
    %v1449 = vand.u32 %v1448, 4294901760
    %v1450 = vsub.f32 %v1448, %v1449
    %v1451 = vand.u32 %v1450, 4294901760
    %1452 = vmatmul.f32.gmra.mxu0 %v1451
    %v1453 = vpop.f32.mrf.mxu0
    %v1454 = vadd.f32 0.0, %v1453
    %1455 = vdwg.mxu0
    %1456 = vmatpush.msra.mxu0 0.0
    %1457 = vmatpush.msra.mxu0 0.0
    %1458 = vmatpush.msra.mxu0 0.0
    %1459 = vmatpush.msra.mxu0 0.0
    %1460 = vmatpush.msra.mxu0 0.0
    %1461 = vmatpush.msra.mxu0 0.0
    %1462 = vmatpush.msra.mxu0 0.0
    %1463 = vmatpush.msra.mxu0 0.0
    %v1464 = vand.u32 %v40, 4294901760
    %v1465 = vsub.f32 %v40, %v1464
    %v1466 = vand.u32 %v1465, 4294901760
    %v1467 = vsub.f32 %v1465, %v1466
    %v1468 = vand.u32 %v1467, 4294901760
    %1469 = vmatpush.msra.mxu0 %v1468
    %v1470 = vand.u32 %v39, 4294901760
    %v1471 = vsub.f32 %v39, %v1470
    %v1472 = vand.u32 %v1471, 4294901760
    %v1473 = vsub.f32 %v1471, %v1472
    %v1474 = vand.u32 %v1473, 4294901760
    %1475 = vmatpush.msra.mxu0 %v1474
    %v1476 = vand.u32 %v38, 4294901760
    %v1477 = vsub.f32 %v38, %v1476
    %v1478 = vand.u32 %v1477, 4294901760
    %v1479 = vsub.f32 %v1477, %v1478
    %v1480 = vand.u32 %v1479, 4294901760
    %1481 = vmatpush.msra.mxu0 %v1480
    %v1482 = vand.u32 %v37, 4294901760
    %v1483 = vsub.f32 %v37, %v1482
    %v1484 = vand.u32 %v1483, 4294901760
    %v1485 = vsub.f32 %v1483, %v1484
    %v1486 = vand.u32 %v1485, 4294901760
    %1487 = vmatpush.msra.mxu0 %v1486
    %v1488 = vand.u32 %v36, 4294901760
    %v1489 = vsub.f32 %v36, %v1488
    %v1490 = vand.u32 %v1489, 4294901760
    %v1491 = vsub.f32 %v1489, %v1490
    %v1492 = vand.u32 %v1491, 4294901760
    %1493 = vmatpush.msra.mxu0 %v1492
    %v1494 = vand.u32 %v35, 4294901760
    %v1495 = vsub.f32 %v35, %v1494
    %v1496 = vand.u32 %v1495, 4294901760
    %v1497 = vsub.f32 %v1495, %v1496
    %v1498 = vand.u32 %v1497, 4294901760
    %1499 = vmatpush.msra.mxu0 %v1498
    %v1500 = vand.u32 %v34, 4294901760
    %v1501 = vsub.f32 %v34, %v1500
    %v1502 = vand.u32 %v1501, 4294901760
    %v1503 = vsub.f32 %v1501, %v1502
    %v1504 = vand.u32 %v1503, 4294901760
    %1505 = vmatpush.msra.mxu0 %v1504
    %v1506 = vand.u32 %v33, 4294901760
    %v1507 = vsub.f32 %v33, %v1506
    %v1508 = vand.u32 %v1507, 4294901760
    %v1509 = vsub.f32 %v1507, %v1508
    %v1510 = vand.u32 %v1509, 4294901760
    %1511 = vmatpush.msra.mxu0 %v1510
    %v1512 = vand.u32 %v1421, 4294901760
    %1513 = vmatmul.f32.gmra.mxu0 %v1512
    %v1514 = vpop.f32.mrf.mxu0
    %v1515 = vadd.f32 %v1454, %v1514
    %1516 = vdwg.mxu0
    %1517 = vmatpush.msra.mxu0 0.0
    %1518 = vmatpush.msra.mxu0 0.0
    %1519 = vmatpush.msra.mxu0 0.0
    %1520 = vmatpush.msra.mxu0 0.0
    %1521 = vmatpush.msra.mxu0 0.0
    %1522 = vmatpush.msra.mxu0 0.0
    %1523 = vmatpush.msra.mxu0 0.0
    %1524 = vmatpush.msra.mxu0 0.0
    %v1525 = vand.u32 %v40, 4294901760
    %v1526 = vsub.f32 %v40, %v1525
    %1527 = vmatpush.msra.mxu0 %v1526
    %v1528 = vand.u32 %v39, 4294901760
    %v1529 = vsub.f32 %v39, %v1528
    %1530 = vmatpush.msra.mxu0 %v1529
    %v1531 = vand.u32 %v38, 4294901760
    %v1532 = vsub.f32 %v38, %v1531
    %1533 = vmatpush.msra.mxu0 %v1532
    %v1534 = vand.u32 %v37, 4294901760
    %v1535 = vsub.f32 %v37, %v1534
    %1536 = vmatpush.msra.mxu0 %v1535
    %v1537 = vand.u32 %v36, 4294901760
    %v1538 = vsub.f32 %v36, %v1537
    %1539 = vmatpush.msra.mxu0 %v1538
    %v1540 = vand.u32 %v35, 4294901760
    %v1541 = vsub.f32 %v35, %v1540
    %1542 = vmatpush.msra.mxu0 %v1541
    %v1543 = vand.u32 %v34, 4294901760
    %v1544 = vsub.f32 %v34, %v1543
    %1545 = vmatpush.msra.mxu0 %v1544
    %v1546 = vand.u32 %v33, 4294901760
    %v1547 = vsub.f32 %v33, %v1546
    %1548 = vmatpush.msra.mxu0 %v1547
    %v1549 = vand.u32 %v1421, 4294901760
    %v1550 = vsub.f32 %v1421, %v1549
    %1551 = vmatmul.f32.gmra.mxu0 %v1550
    %v1552 = vpop.f32.mrf.mxu0
    %v1553 = vadd.f32 %v1515, %v1552
    %1554 = vdwg.mxu0
    %1555 = vmatpush.msra.mxu0 0.0
    %1556 = vmatpush.msra.mxu0 0.0
    %1557 = vmatpush.msra.mxu0 0.0
    %1558 = vmatpush.msra.mxu0 0.0
    %1559 = vmatpush.msra.mxu0 0.0
    %1560 = vmatpush.msra.mxu0 0.0
    %1561 = vmatpush.msra.mxu0 0.0
    %1562 = vmatpush.msra.mxu0 0.0
    %v1563 = vand.u32 %v40, 4294901760
    %1564 = vmatpush.msra.mxu0 %v1563
    %v1565 = vand.u32 %v39, 4294901760
    %1566 = vmatpush.msra.mxu0 %v1565
    %v1567 = vand.u32 %v38, 4294901760
    %1568 = vmatpush.msra.mxu0 %v1567
    %v1569 = vand.u32 %v37, 4294901760
    %1570 = vmatpush.msra.mxu0 %v1569
    %v1571 = vand.u32 %v36, 4294901760
    %1572 = vmatpush.msra.mxu0 %v1571
    %v1573 = vand.u32 %v35, 4294901760
    %1574 = vmatpush.msra.mxu0 %v1573
    %v1575 = vand.u32 %v34, 4294901760
    %1576 = vmatpush.msra.mxu0 %v1575
    %v1577 = vand.u32 %v33, 4294901760
    %1578 = vmatpush.msra.mxu0 %v1577
    %v1579 = vand.u32 %v1421, 4294901760
    %v1580 = vsub.f32 %v1421, %v1579
    %v1581 = vand.u32 %v1580, 4294901760
    %1582 = vmatmul.f32.gmra.mxu0 %v1581
    %v1583 = vpop.f32.mrf.mxu0
    %v1584 = vadd.f32 %v1553, %v1583
    %1585 = vdwg.mxu0
    %1586 = vmatpush.msra.mxu0 0.0
    %1587 = vmatpush.msra.mxu0 0.0
    %1588 = vmatpush.msra.mxu0 0.0
    %1589 = vmatpush.msra.mxu0 0.0
    %1590 = vmatpush.msra.mxu0 0.0
    %1591 = vmatpush.msra.mxu0 0.0
    %1592 = vmatpush.msra.mxu0 0.0
    %1593 = vmatpush.msra.mxu0 0.0
    %v1594 = vand.u32 %v40, 4294901760
    %v1595 = vsub.f32 %v40, %v1594
    %v1596 = vand.u32 %v1595, 4294901760
    %1597 = vmatpush.msra.mxu0 %v1596
    %v1598 = vand.u32 %v39, 4294901760
    %v1599 = vsub.f32 %v39, %v1598
    %v1600 = vand.u32 %v1599, 4294901760
    %1601 = vmatpush.msra.mxu0 %v1600
    %v1602 = vand.u32 %v38, 4294901760
    %v1603 = vsub.f32 %v38, %v1602
    %v1604 = vand.u32 %v1603, 4294901760
    %1605 = vmatpush.msra.mxu0 %v1604
    %v1606 = vand.u32 %v37, 4294901760
    %v1607 = vsub.f32 %v37, %v1606
    %v1608 = vand.u32 %v1607, 4294901760
    %1609 = vmatpush.msra.mxu0 %v1608
    %v1610 = vand.u32 %v36, 4294901760
    %v1611 = vsub.f32 %v36, %v1610
    %v1612 = vand.u32 %v1611, 4294901760
    %1613 = vmatpush.msra.mxu0 %v1612
    %v1614 = vand.u32 %v35, 4294901760
    %v1615 = vsub.f32 %v35, %v1614
    %v1616 = vand.u32 %v1615, 4294901760
    %1617 = vmatpush.msra.mxu0 %v1616
    %v1618 = vand.u32 %v34, 4294901760
    %v1619 = vsub.f32 %v34, %v1618
    %v1620 = vand.u32 %v1619, 4294901760
    %1621 = vmatpush.msra.mxu0 %v1620
    %v1622 = vand.u32 %v33, 4294901760
    %v1623 = vsub.f32 %v33, %v1622
    %v1624 = vand.u32 %v1623, 4294901760
    %1625 = vmatpush.msra.mxu0 %v1624
    %v1626 = vand.u32 %v1421, 4294901760
    %1627 = vmatmul.f32.gmra.mxu0 %v1626
    %v1628 = vpop.f32.mrf.mxu0
    %v1629 = vadd.f32 %v1584, %v1628
    %1630 = vdwg.mxu0
    %1631 = vmatpush.msra.mxu0 0.0
    %1632 = vmatpush.msra.mxu0 0.0
    %1633 = vmatpush.msra.mxu0 0.0
    %1634 = vmatpush.msra.mxu0 0.0
    %1635 = vmatpush.msra.mxu0 0.0
    %1636 = vmatpush.msra.mxu0 0.0
    %1637 = vmatpush.msra.mxu0 0.0
    %1638 = vmatpush.msra.mxu0 0.0
    %v1639 = vand.u32 %v40, 4294901760
    %1640 = vmatpush.msra.mxu0 %v1639
    %v1641 = vand.u32 %v39, 4294901760
    %1642 = vmatpush.msra.mxu0 %v1641
    %v1643 = vand.u32 %v38, 4294901760
    %1644 = vmatpush.msra.mxu0 %v1643
    %v1645 = vand.u32 %v37, 4294901760
    %1646 = vmatpush.msra.mxu0 %v1645
    %v1647 = vand.u32 %v36, 4294901760
    %1648 = vmatpush.msra.mxu0 %v1647
    %v1649 = vand.u32 %v35, 4294901760
    %1650 = vmatpush.msra.mxu0 %v1649
    %v1651 = vand.u32 %v34, 4294901760
    %1652 = vmatpush.msra.mxu0 %v1651
    %v1653 = vand.u32 %v33, 4294901760
    %1654 = vmatpush.msra.mxu0 %v1653
    %v1655 = vand.u32 %v1421, 4294901760
    %1656 = vmatmul.f32.gmra.mxu0 %v1655
    %v1657 = vpop.f32.mrf.mxu0
    %v1658 = vadd.f32 %v1629, %v1657
    %1659 = vdwg.mxu0
    %v1660 = vadd.f32 %v437, %v1658
    %v1661 = vtanh.pop %v1660
    %v1663 = vsel %vm451, %v1661, 0
    %1665 = vmatpush.msra.mxu0 0.0
    %1666 = vmatpush.msra.mxu0 0.0
    %1667 = vmatpush.msra.mxu0 0.0
    %1668 = vmatpush.msra.mxu0 0.0
    %1669 = vmatpush.msra.mxu0 0.0
    %1670 = vmatpush.msra.mxu0 0.0
    %1671 = vmatpush.msra.mxu0 0.0
    %1672 = vmatpush.msra.mxu0 0.0
    %v1673 = vand.u32 %v40, 4294901760
    %1674 = vmatpush.msra.mxu0 %v1673
    %v1675 = vand.u32 %v39, 4294901760
    %1676 = vmatpush.msra.mxu0 %v1675
    %v1677 = vand.u32 %v38, 4294901760
    %1678 = vmatpush.msra.mxu0 %v1677
    %v1679 = vand.u32 %v37, 4294901760
    %1680 = vmatpush.msra.mxu0 %v1679
    %v1681 = vand.u32 %v36, 4294901760
    %1682 = vmatpush.msra.mxu0 %v1681
    %v1683 = vand.u32 %v35, 4294901760
    %1684 = vmatpush.msra.mxu0 %v1683
    %v1685 = vand.u32 %v34, 4294901760
    %1686 = vmatpush.msra.mxu0 %v1685
    %v1687 = vand.u32 %v33, 4294901760
    %1688 = vmatpush.msra.mxu0 %v1687
    %v1689 = vand.u32 %v1663, 4294901760
    %v1690 = vsub.f32 %v1663, %v1689
    %v1691 = vand.u32 %v1690, 4294901760
    %v1692 = vsub.f32 %v1690, %v1691
    %v1693 = vand.u32 %v1692, 4294901760
    %1694 = vmatmul.f32.gmra.mxu0 %v1693
    %v1695 = vpop.f32.mrf.mxu0
    %v1696 = vadd.f32 0.0, %v1695
    %1697 = vdwg.mxu0
    %1698 = vmatpush.msra.mxu0 0.0
    %1699 = vmatpush.msra.mxu0 0.0
    %1700 = vmatpush.msra.mxu0 0.0
    %1701 = vmatpush.msra.mxu0 0.0
    %1702 = vmatpush.msra.mxu0 0.0
    %1703 = vmatpush.msra.mxu0 0.0
    %1704 = vmatpush.msra.mxu0 0.0
    %1705 = vmatpush.msra.mxu0 0.0
    %v1706 = vand.u32 %v40, 4294901760
    %v1707 = vsub.f32 %v40, %v1706
    %v1708 = vand.u32 %v1707, 4294901760
    %v1709 = vsub.f32 %v1707, %v1708
    %v1710 = vand.u32 %v1709, 4294901760
    %1711 = vmatpush.msra.mxu0 %v1710
    %v1712 = vand.u32 %v39, 4294901760
    %v1713 = vsub.f32 %v39, %v1712
    %v1714 = vand.u32 %v1713, 4294901760
    %v1715 = vsub.f32 %v1713, %v1714
    %v1716 = vand.u32 %v1715, 4294901760
    %1717 = vmatpush.msra.mxu0 %v1716
    %v1718 = vand.u32 %v38, 4294901760
    %v1719 = vsub.f32 %v38, %v1718
    %v1720 = vand.u32 %v1719, 4294901760
    %v1721 = vsub.f32 %v1719, %v1720
    %v1722 = vand.u32 %v1721, 4294901760
    %1723 = vmatpush.msra.mxu0 %v1722
    %v1724 = vand.u32 %v37, 4294901760
    %v1725 = vsub.f32 %v37, %v1724
    %v1726 = vand.u32 %v1725, 4294901760
    %v1727 = vsub.f32 %v1725, %v1726
    %v1728 = vand.u32 %v1727, 4294901760
    %1729 = vmatpush.msra.mxu0 %v1728
    %v1730 = vand.u32 %v36, 4294901760
    %v1731 = vsub.f32 %v36, %v1730
    %v1732 = vand.u32 %v1731, 4294901760
    %v1733 = vsub.f32 %v1731, %v1732
    %v1734 = vand.u32 %v1733, 4294901760
    %1735 = vmatpush.msra.mxu0 %v1734
    %v1736 = vand.u32 %v35, 4294901760
    %v1737 = vsub.f32 %v35, %v1736
    %v1738 = vand.u32 %v1737, 4294901760
    %v1739 = vsub.f32 %v1737, %v1738
    %v1740 = vand.u32 %v1739, 4294901760
    %1741 = vmatpush.msra.mxu0 %v1740
    %v1742 = vand.u32 %v34, 4294901760
    %v1743 = vsub.f32 %v34, %v1742
    %v1744 = vand.u32 %v1743, 4294901760
    %v1745 = vsub.f32 %v1743, %v1744
    %v1746 = vand.u32 %v1745, 4294901760
    %1747 = vmatpush.msra.mxu0 %v1746
    %v1748 = vand.u32 %v33, 4294901760
    %v1749 = vsub.f32 %v33, %v1748
    %v1750 = vand.u32 %v1749, 4294901760
    %v1751 = vsub.f32 %v1749, %v1750
    %v1752 = vand.u32 %v1751, 4294901760
    %1753 = vmatpush.msra.mxu0 %v1752
    %v1754 = vand.u32 %v1663, 4294901760
    %1755 = vmatmul.f32.gmra.mxu0 %v1754
    %v1756 = vpop.f32.mrf.mxu0
    %v1757 = vadd.f32 %v1696, %v1756
    %1758 = vdwg.mxu0
    %1759 = vmatpush.msra.mxu0 0.0
    %1760 = vmatpush.msra.mxu0 0.0
    %1761 = vmatpush.msra.mxu0 0.0
    %1762 = vmatpush.msra.mxu0 0.0
    %1763 = vmatpush.msra.mxu0 0.0
    %1764 = vmatpush.msra.mxu0 0.0
    %1765 = vmatpush.msra.mxu0 0.0
    %1766 = vmatpush.msra.mxu0 0.0
    %v1767 = vand.u32 %v40, 4294901760
    %v1768 = vsub.f32 %v40, %v1767
    %1769 = vmatpush.msra.mxu0 %v1768
    %v1770 = vand.u32 %v39, 4294901760
    %v1771 = vsub.f32 %v39, %v1770
    %1772 = vmatpush.msra.mxu0 %v1771
    %v1773 = vand.u32 %v38, 4294901760
    %v1774 = vsub.f32 %v38, %v1773
    %1775 = vmatpush.msra.mxu0 %v1774
    %v1776 = vand.u32 %v37, 4294901760
    %v1777 = vsub.f32 %v37, %v1776
    %1778 = vmatpush.msra.mxu0 %v1777
    %v1779 = vand.u32 %v36, 4294901760
    %v1780 = vsub.f32 %v36, %v1779
    %1781 = vmatpush.msra.mxu0 %v1780
    %v1782 = vand.u32 %v35, 4294901760
    %v1783 = vsub.f32 %v35, %v1782
    %1784 = vmatpush.msra.mxu0 %v1783
    %v1785 = vand.u32 %v34, 4294901760
    %v1786 = vsub.f32 %v34, %v1785
    %1787 = vmatpush.msra.mxu0 %v1786
    %v1788 = vand.u32 %v33, 4294901760
    %v1789 = vsub.f32 %v33, %v1788
    %1790 = vmatpush.msra.mxu0 %v1789
    %v1791 = vand.u32 %v1663, 4294901760
    %v1792 = vsub.f32 %v1663, %v1791
    %1793 = vmatmul.f32.gmra.mxu0 %v1792
    %v1794 = vpop.f32.mrf.mxu0
    %v1795 = vadd.f32 %v1757, %v1794
    %1796 = vdwg.mxu0
    %1797 = vmatpush.msra.mxu0 0.0
    %1798 = vmatpush.msra.mxu0 0.0
    %1799 = vmatpush.msra.mxu0 0.0
    %1800 = vmatpush.msra.mxu0 0.0
    %1801 = vmatpush.msra.mxu0 0.0
    %1802 = vmatpush.msra.mxu0 0.0
    %1803 = vmatpush.msra.mxu0 0.0
    %1804 = vmatpush.msra.mxu0 0.0
    %v1805 = vand.u32 %v40, 4294901760
    %1806 = vmatpush.msra.mxu0 %v1805
    %v1807 = vand.u32 %v39, 4294901760
    %1808 = vmatpush.msra.mxu0 %v1807
    %v1809 = vand.u32 %v38, 4294901760
    %1810 = vmatpush.msra.mxu0 %v1809
    %v1811 = vand.u32 %v37, 4294901760
    %1812 = vmatpush.msra.mxu0 %v1811
    %v1813 = vand.u32 %v36, 4294901760
    %1814 = vmatpush.msra.mxu0 %v1813
    %v1815 = vand.u32 %v35, 4294901760
    %1816 = vmatpush.msra.mxu0 %v1815
    %v1817 = vand.u32 %v34, 4294901760
    %1818 = vmatpush.msra.mxu0 %v1817
    %v1819 = vand.u32 %v33, 4294901760
    %1820 = vmatpush.msra.mxu0 %v1819
    %v1821 = vand.u32 %v1663, 4294901760
    %v1822 = vsub.f32 %v1663, %v1821
    %v1823 = vand.u32 %v1822, 4294901760
    %1824 = vmatmul.f32.gmra.mxu0 %v1823
    %v1825 = vpop.f32.mrf.mxu0
    %v1826 = vadd.f32 %v1795, %v1825
    %1827 = vdwg.mxu0
    %1828 = vmatpush.msra.mxu0 0.0
    %1829 = vmatpush.msra.mxu0 0.0
    %1830 = vmatpush.msra.mxu0 0.0
    %1831 = vmatpush.msra.mxu0 0.0
    %1832 = vmatpush.msra.mxu0 0.0
    %1833 = vmatpush.msra.mxu0 0.0
    %1834 = vmatpush.msra.mxu0 0.0
    %1835 = vmatpush.msra.mxu0 0.0
    %v1836 = vand.u32 %v40, 4294901760
    %v1837 = vsub.f32 %v40, %v1836
    %v1838 = vand.u32 %v1837, 4294901760
    %1839 = vmatpush.msra.mxu0 %v1838
    %v1840 = vand.u32 %v39, 4294901760
    %v1841 = vsub.f32 %v39, %v1840
    %v1842 = vand.u32 %v1841, 4294901760
    %1843 = vmatpush.msra.mxu0 %v1842
    %v1844 = vand.u32 %v38, 4294901760
    %v1845 = vsub.f32 %v38, %v1844
    %v1846 = vand.u32 %v1845, 4294901760
    %1847 = vmatpush.msra.mxu0 %v1846
    %v1848 = vand.u32 %v37, 4294901760
    %v1849 = vsub.f32 %v37, %v1848
    %v1850 = vand.u32 %v1849, 4294901760
    %1851 = vmatpush.msra.mxu0 %v1850
    %v1852 = vand.u32 %v36, 4294901760
    %v1853 = vsub.f32 %v36, %v1852
    %v1854 = vand.u32 %v1853, 4294901760
    %1855 = vmatpush.msra.mxu0 %v1854
    %v1856 = vand.u32 %v35, 4294901760
    %v1857 = vsub.f32 %v35, %v1856
    %v1858 = vand.u32 %v1857, 4294901760
    %1859 = vmatpush.msra.mxu0 %v1858
    %v1860 = vand.u32 %v34, 4294901760
    %v1861 = vsub.f32 %v34, %v1860
    %v1862 = vand.u32 %v1861, 4294901760
    %1863 = vmatpush.msra.mxu0 %v1862
    %v1864 = vand.u32 %v33, 4294901760
    %v1865 = vsub.f32 %v33, %v1864
    %v1866 = vand.u32 %v1865, 4294901760
    %1867 = vmatpush.msra.mxu0 %v1866
    %v1868 = vand.u32 %v1663, 4294901760
    %1869 = vmatmul.f32.gmra.mxu0 %v1868
    %v1870 = vpop.f32.mrf.mxu0
    %v1871 = vadd.f32 %v1826, %v1870
    %1872 = vdwg.mxu0
    %1873 = vmatpush.msra.mxu0 0.0
    %1874 = vmatpush.msra.mxu0 0.0
    %1875 = vmatpush.msra.mxu0 0.0
    %1876 = vmatpush.msra.mxu0 0.0
    %1877 = vmatpush.msra.mxu0 0.0
    %1878 = vmatpush.msra.mxu0 0.0
    %1879 = vmatpush.msra.mxu0 0.0
    %1880 = vmatpush.msra.mxu0 0.0
    %v1881 = vand.u32 %v40, 4294901760
    %1882 = vmatpush.msra.mxu0 %v1881
    %v1883 = vand.u32 %v39, 4294901760
    %1884 = vmatpush.msra.mxu0 %v1883
    %v1885 = vand.u32 %v38, 4294901760
    %1886 = vmatpush.msra.mxu0 %v1885
    %v1887 = vand.u32 %v37, 4294901760
    %1888 = vmatpush.msra.mxu0 %v1887
    %v1889 = vand.u32 %v36, 4294901760
    %1890 = vmatpush.msra.mxu0 %v1889
    %v1891 = vand.u32 %v35, 4294901760
    %1892 = vmatpush.msra.mxu0 %v1891
    %v1893 = vand.u32 %v34, 4294901760
    %1894 = vmatpush.msra.mxu0 %v1893
    %v1895 = vand.u32 %v33, 4294901760
    %1896 = vmatpush.msra.mxu0 %v1895
    %v1897 = vand.u32 %v1663, 4294901760
    %1898 = vmatmul.f32.gmra.mxu0 %v1897
    %v1899 = vpop.f32.mrf.mxu0
    %v1900 = vadd.f32 %v1871, %v1899
    %1901 = vdwg.mxu0
    %v1902 = vadd.f32 %v441, %v1900
    %v1903 = vtanh.pop %v1902
    %v1905 = vsel %vm451, %v1903, 0
    %1907 = vmatpush.msra.mxu0 0.0
    %1908 = vmatpush.msra.mxu0 0.0
    %1909 = vmatpush.msra.mxu0 0.0
    %1910 = vmatpush.msra.mxu0 0.0
    %1911 = vmatpush.msra.mxu0 0.0
    %1912 = vmatpush.msra.mxu0 0.0
    %1913 = vmatpush.msra.mxu0 0.0
    %1914 = vmatpush.msra.mxu0 0.0
    %v1915 = vand.u32 %v40, 4294901760
    %1916 = vmatpush.msra.mxu0 %v1915
    %v1917 = vand.u32 %v39, 4294901760
    %1918 = vmatpush.msra.mxu0 %v1917
    %v1919 = vand.u32 %v38, 4294901760
    %1920 = vmatpush.msra.mxu0 %v1919
    %v1921 = vand.u32 %v37, 4294901760
    %1922 = vmatpush.msra.mxu0 %v1921
    %v1923 = vand.u32 %v36, 4294901760
    %1924 = vmatpush.msra.mxu0 %v1923
    %v1925 = vand.u32 %v35, 4294901760
    %1926 = vmatpush.msra.mxu0 %v1925
    %v1927 = vand.u32 %v34, 4294901760
    %1928 = vmatpush.msra.mxu0 %v1927
    %v1929 = vand.u32 %v33, 4294901760
    %1930 = vmatpush.msra.mxu0 %v1929
    %v1931 = vand.u32 %v1905, 4294901760
    %v1932 = vsub.f32 %v1905, %v1931
    %v1933 = vand.u32 %v1932, 4294901760
    %v1934 = vsub.f32 %v1932, %v1933
    %v1935 = vand.u32 %v1934, 4294901760
    %1936 = vmatmul.f32.gmra.mxu0 %v1935
    %v1937 = vpop.f32.mrf.mxu0
    %v1938 = vadd.f32 0.0, %v1937
    %1939 = vdwg.mxu0
    %1940 = vmatpush.msra.mxu0 0.0
    %1941 = vmatpush.msra.mxu0 0.0
    %1942 = vmatpush.msra.mxu0 0.0
    %1943 = vmatpush.msra.mxu0 0.0
    %1944 = vmatpush.msra.mxu0 0.0
    %1945 = vmatpush.msra.mxu0 0.0
    %1946 = vmatpush.msra.mxu0 0.0
    %1947 = vmatpush.msra.mxu0 0.0
    %v1948 = vand.u32 %v40, 4294901760
    %v1949 = vsub.f32 %v40, %v1948
    %v1950 = vand.u32 %v1949, 4294901760
    %v1951 = vsub.f32 %v1949, %v1950
    %v1952 = vand.u32 %v1951, 4294901760
    %1953 = vmatpush.msra.mxu0 %v1952
    %v1954 = vand.u32 %v39, 4294901760
    %v1955 = vsub.f32 %v39, %v1954
    %v1956 = vand.u32 %v1955, 4294901760
    %v1957 = vsub.f32 %v1955, %v1956
    %v1958 = vand.u32 %v1957, 4294901760
    %1959 = vmatpush.msra.mxu0 %v1958
    %v1960 = vand.u32 %v38, 4294901760
    %v1961 = vsub.f32 %v38, %v1960
    %v1962 = vand.u32 %v1961, 4294901760
    %v1963 = vsub.f32 %v1961, %v1962
    %v1964 = vand.u32 %v1963, 4294901760
    %1965 = vmatpush.msra.mxu0 %v1964
    %v1966 = vand.u32 %v37, 4294901760
    %v1967 = vsub.f32 %v37, %v1966
    %v1968 = vand.u32 %v1967, 4294901760
    %v1969 = vsub.f32 %v1967, %v1968
    %v1970 = vand.u32 %v1969, 4294901760
    %1971 = vmatpush.msra.mxu0 %v1970
    %v1972 = vand.u32 %v36, 4294901760
    %v1973 = vsub.f32 %v36, %v1972
    %v1974 = vand.u32 %v1973, 4294901760
    %v1975 = vsub.f32 %v1973, %v1974
    %v1976 = vand.u32 %v1975, 4294901760
    %1977 = vmatpush.msra.mxu0 %v1976
    %v1978 = vand.u32 %v35, 4294901760
    %v1979 = vsub.f32 %v35, %v1978
    %v1980 = vand.u32 %v1979, 4294901760
    %v1981 = vsub.f32 %v1979, %v1980
    %v1982 = vand.u32 %v1981, 4294901760
    %1983 = vmatpush.msra.mxu0 %v1982
    %v1984 = vand.u32 %v34, 4294901760
    %v1985 = vsub.f32 %v34, %v1984
    %v1986 = vand.u32 %v1985, 4294901760
    %v1987 = vsub.f32 %v1985, %v1986
    %v1988 = vand.u32 %v1987, 4294901760
    %1989 = vmatpush.msra.mxu0 %v1988
    %v1990 = vand.u32 %v33, 4294901760
    %v1991 = vsub.f32 %v33, %v1990
    %v1992 = vand.u32 %v1991, 4294901760
    %v1993 = vsub.f32 %v1991, %v1992
    %v1994 = vand.u32 %v1993, 4294901760
    %1995 = vmatpush.msra.mxu0 %v1994
    %v1996 = vand.u32 %v1905, 4294901760
    %1997 = vmatmul.f32.gmra.mxu0 %v1996
    %v1998 = vpop.f32.mrf.mxu0
    %v1999 = vadd.f32 %v1938, %v1998
    %2000 = vdwg.mxu0
    %2001 = vmatpush.msra.mxu0 0.0
    %2002 = vmatpush.msra.mxu0 0.0
    %2003 = vmatpush.msra.mxu0 0.0
    %2004 = vmatpush.msra.mxu0 0.0
    %2005 = vmatpush.msra.mxu0 0.0
    %2006 = vmatpush.msra.mxu0 0.0
    %2007 = vmatpush.msra.mxu0 0.0
    %2008 = vmatpush.msra.mxu0 0.0
    %v2009 = vand.u32 %v40, 4294901760
    %v2010 = vsub.f32 %v40, %v2009
    %2011 = vmatpush.msra.mxu0 %v2010
    %v2012 = vand.u32 %v39, 4294901760
    %v2013 = vsub.f32 %v39, %v2012
    %2014 = vmatpush.msra.mxu0 %v2013
    %v2015 = vand.u32 %v38, 4294901760
    %v2016 = vsub.f32 %v38, %v2015
    %2017 = vmatpush.msra.mxu0 %v2016
    %v2018 = vand.u32 %v37, 4294901760
    %v2019 = vsub.f32 %v37, %v2018
    %2020 = vmatpush.msra.mxu0 %v2019
    %v2021 = vand.u32 %v36, 4294901760
    %v2022 = vsub.f32 %v36, %v2021
    %2023 = vmatpush.msra.mxu0 %v2022
    %v2024 = vand.u32 %v35, 4294901760
    %v2025 = vsub.f32 %v35, %v2024
    %2026 = vmatpush.msra.mxu0 %v2025
    %v2027 = vand.u32 %v34, 4294901760
    %v2028 = vsub.f32 %v34, %v2027
    %2029 = vmatpush.msra.mxu0 %v2028
    %v2030 = vand.u32 %v33, 4294901760
    %v2031 = vsub.f32 %v33, %v2030
    %2032 = vmatpush.msra.mxu0 %v2031
    %v2033 = vand.u32 %v1905, 4294901760
    %v2034 = vsub.f32 %v1905, %v2033
    %2035 = vmatmul.f32.gmra.mxu0 %v2034
    %v2036 = vpop.f32.mrf.mxu0
    %v2037 = vadd.f32 %v1999, %v2036
    %2038 = vdwg.mxu0
    %2039 = vmatpush.msra.mxu0 0.0
    %2040 = vmatpush.msra.mxu0 0.0
    %2041 = vmatpush.msra.mxu0 0.0
    %2042 = vmatpush.msra.mxu0 0.0
    %2043 = vmatpush.msra.mxu0 0.0
    %2044 = vmatpush.msra.mxu0 0.0
    %2045 = vmatpush.msra.mxu0 0.0
    %2046 = vmatpush.msra.mxu0 0.0
    %v2047 = vand.u32 %v40, 4294901760
    %2048 = vmatpush.msra.mxu0 %v2047
    %v2049 = vand.u32 %v39, 4294901760
    %2050 = vmatpush.msra.mxu0 %v2049
    %v2051 = vand.u32 %v38, 4294901760
    %2052 = vmatpush.msra.mxu0 %v2051
    %v2053 = vand.u32 %v37, 4294901760
    %2054 = vmatpush.msra.mxu0 %v2053
    %v2055 = vand.u32 %v36, 4294901760
    %2056 = vmatpush.msra.mxu0 %v2055
    %v2057 = vand.u32 %v35, 4294901760
    %2058 = vmatpush.msra.mxu0 %v2057
    %v2059 = vand.u32 %v34, 4294901760
    %2060 = vmatpush.msra.mxu0 %v2059
    %v2061 = vand.u32 %v33, 4294901760
    %2062 = vmatpush.msra.mxu0 %v2061
    %v2063 = vand.u32 %v1905, 4294901760
    %v2064 = vsub.f32 %v1905, %v2063
    %v2065 = vand.u32 %v2064, 4294901760
    %2066 = vmatmul.f32.gmra.mxu0 %v2065
    %v2067 = vpop.f32.mrf.mxu0
    %v2068 = vadd.f32 %v2037, %v2067
    %2069 = vdwg.mxu0
    %2070 = vmatpush.msra.mxu0 0.0
    %2071 = vmatpush.msra.mxu0 0.0
    %2072 = vmatpush.msra.mxu0 0.0
    %2073 = vmatpush.msra.mxu0 0.0
    %2074 = vmatpush.msra.mxu0 0.0
    %2075 = vmatpush.msra.mxu0 0.0
    %2076 = vmatpush.msra.mxu0 0.0
    %2077 = vmatpush.msra.mxu0 0.0
    %v2078 = vand.u32 %v40, 4294901760
    %v2079 = vsub.f32 %v40, %v2078
    %v2080 = vand.u32 %v2079, 4294901760
    %2081 = vmatpush.msra.mxu0 %v2080
    %v2082 = vand.u32 %v39, 4294901760
    %v2083 = vsub.f32 %v39, %v2082
    %v2084 = vand.u32 %v2083, 4294901760
    %2085 = vmatpush.msra.mxu0 %v2084
    %v2086 = vand.u32 %v38, 4294901760
    %v2087 = vsub.f32 %v38, %v2086
    %v2088 = vand.u32 %v2087, 4294901760
    %2089 = vmatpush.msra.mxu0 %v2088
    %v2090 = vand.u32 %v37, 4294901760
    %v2091 = vsub.f32 %v37, %v2090
    %v2092 = vand.u32 %v2091, 4294901760
    %2093 = vmatpush.msra.mxu0 %v2092
    %v2094 = vand.u32 %v36, 4294901760
    %v2095 = vsub.f32 %v36, %v2094
    %v2096 = vand.u32 %v2095, 4294901760
    %2097 = vmatpush.msra.mxu0 %v2096
    %v2098 = vand.u32 %v35, 4294901760
    %v2099 = vsub.f32 %v35, %v2098
    %v2100 = vand.u32 %v2099, 4294901760
    %2101 = vmatpush.msra.mxu0 %v2100
    %v2102 = vand.u32 %v34, 4294901760
    %v2103 = vsub.f32 %v34, %v2102
    %v2104 = vand.u32 %v2103, 4294901760
    %2105 = vmatpush.msra.mxu0 %v2104
    %v2106 = vand.u32 %v33, 4294901760
    %v2107 = vsub.f32 %v33, %v2106
    %v2108 = vand.u32 %v2107, 4294901760
    %2109 = vmatpush.msra.mxu0 %v2108
    %v2110 = vand.u32 %v1905, 4294901760
    %2111 = vmatmul.f32.gmra.mxu0 %v2110
    %v2112 = vpop.f32.mrf.mxu0
    %v2113 = vadd.f32 %v2068, %v2112
    %2114 = vdwg.mxu0
    %2115 = vmatpush.msra.mxu0 0.0
    %2116 = vmatpush.msra.mxu0 0.0
    %2117 = vmatpush.msra.mxu0 0.0
    %2118 = vmatpush.msra.mxu0 0.0
    %2119 = vmatpush.msra.mxu0 0.0
    %2120 = vmatpush.msra.mxu0 0.0
    %2121 = vmatpush.msra.mxu0 0.0
    %2122 = vmatpush.msra.mxu0 0.0
    %v2123 = vand.u32 %v40, 4294901760
    %2124 = vmatpush.msra.mxu0 %v2123
    %v2125 = vand.u32 %v39, 4294901760
    %2126 = vmatpush.msra.mxu0 %v2125
    %v2127 = vand.u32 %v38, 4294901760
    %2128 = vmatpush.msra.mxu0 %v2127
    %v2129 = vand.u32 %v37, 4294901760
    %2130 = vmatpush.msra.mxu0 %v2129
    %v2131 = vand.u32 %v36, 4294901760
    %2132 = vmatpush.msra.mxu0 %v2131
    %v2133 = vand.u32 %v35, 4294901760
    %2134 = vmatpush.msra.mxu0 %v2133
    %v2135 = vand.u32 %v34, 4294901760
    %2136 = vmatpush.msra.mxu0 %v2135
    %v2137 = vand.u32 %v33, 4294901760
    %2138 = vmatpush.msra.mxu0 %v2137
    %v2139 = vand.u32 %v1905, 4294901760
    %2140 = vmatmul.f32.gmra.mxu0 %v2139
    %v2141 = vpop.f32.mrf.mxu0
    %v2142 = vadd.f32 %v2113, %v2141
    %2143 = vdwg.mxu0
    %v2144 = vadd.f32 %v445, %v2142
    %v2145 = vtanh.pop %v2144
    %v2147 = vsel %vm451, %v2145, 0
    %2149 = vmatpush.msra.mxu0 0.0
    %2150 = vmatpush.msra.mxu0 0.0
    %2151 = vmatpush.msra.mxu0 0.0
    %2152 = vmatpush.msra.mxu0 0.0
    %2153 = vmatpush.msra.mxu0 0.0
    %2154 = vmatpush.msra.mxu0 0.0
    %2155 = vmatpush.msra.mxu0 0.0
    %2156 = vmatpush.msra.mxu0 0.0
    %v2157 = vand.u32 %v40, 4294901760
    %2158 = vmatpush.msra.mxu0 %v2157
    %v2159 = vand.u32 %v39, 4294901760
    %2160 = vmatpush.msra.mxu0 %v2159
    %v2161 = vand.u32 %v38, 4294901760
    %2162 = vmatpush.msra.mxu0 %v2161
    %v2163 = vand.u32 %v37, 4294901760
    %2164 = vmatpush.msra.mxu0 %v2163
    %v2165 = vand.u32 %v36, 4294901760
    %2166 = vmatpush.msra.mxu0 %v2165
    %v2167 = vand.u32 %v35, 4294901760
    %2168 = vmatpush.msra.mxu0 %v2167
    %v2169 = vand.u32 %v34, 4294901760
    %2170 = vmatpush.msra.mxu0 %v2169
    %v2171 = vand.u32 %v33, 4294901760
    %2172 = vmatpush.msra.mxu0 %v2171
    %v2173 = vand.u32 %v2147, 4294901760
    %v2174 = vsub.f32 %v2147, %v2173
    %v2175 = vand.u32 %v2174, 4294901760
    %v2176 = vsub.f32 %v2174, %v2175
    %v2177 = vand.u32 %v2176, 4294901760
    %2178 = vmatmul.f32.gmra.mxu0 %v2177
    %v2179 = vpop.f32.mrf.mxu0
    %v2180 = vadd.f32 0.0, %v2179
    %2181 = vdwg.mxu0
    %2182 = vmatpush.msra.mxu0 0.0
    %2183 = vmatpush.msra.mxu0 0.0
    %2184 = vmatpush.msra.mxu0 0.0
    %2185 = vmatpush.msra.mxu0 0.0
    %2186 = vmatpush.msra.mxu0 0.0
    %2187 = vmatpush.msra.mxu0 0.0
    %2188 = vmatpush.msra.mxu0 0.0
    %2189 = vmatpush.msra.mxu0 0.0
    %v2190 = vand.u32 %v40, 4294901760
    %v2191 = vsub.f32 %v40, %v2190
    %v2192 = vand.u32 %v2191, 4294901760
    %v2193 = vsub.f32 %v2191, %v2192
    %v2194 = vand.u32 %v2193, 4294901760
    %2195 = vmatpush.msra.mxu0 %v2194
    %v2196 = vand.u32 %v39, 4294901760
    %v2197 = vsub.f32 %v39, %v2196
    %v2198 = vand.u32 %v2197, 4294901760
    %v2199 = vsub.f32 %v2197, %v2198
    %v2200 = vand.u32 %v2199, 4294901760
    %2201 = vmatpush.msra.mxu0 %v2200
    %v2202 = vand.u32 %v38, 4294901760
    %v2203 = vsub.f32 %v38, %v2202
    %v2204 = vand.u32 %v2203, 4294901760
    %v2205 = vsub.f32 %v2203, %v2204
    %v2206 = vand.u32 %v2205, 4294901760
    %2207 = vmatpush.msra.mxu0 %v2206
    %v2208 = vand.u32 %v37, 4294901760
    %v2209 = vsub.f32 %v37, %v2208
    %v2210 = vand.u32 %v2209, 4294901760
    %v2211 = vsub.f32 %v2209, %v2210
    %v2212 = vand.u32 %v2211, 4294901760
    %2213 = vmatpush.msra.mxu0 %v2212
    %v2214 = vand.u32 %v36, 4294901760
    %v2215 = vsub.f32 %v36, %v2214
    %v2216 = vand.u32 %v2215, 4294901760
    %v2217 = vsub.f32 %v2215, %v2216
    %v2218 = vand.u32 %v2217, 4294901760
    %2219 = vmatpush.msra.mxu0 %v2218
    %v2220 = vand.u32 %v35, 4294901760
    %v2221 = vsub.f32 %v35, %v2220
    %v2222 = vand.u32 %v2221, 4294901760
    %v2223 = vsub.f32 %v2221, %v2222
    %v2224 = vand.u32 %v2223, 4294901760
    %2225 = vmatpush.msra.mxu0 %v2224
    %v2226 = vand.u32 %v34, 4294901760
    %v2227 = vsub.f32 %v34, %v2226
    %v2228 = vand.u32 %v2227, 4294901760
    %v2229 = vsub.f32 %v2227, %v2228
    %v2230 = vand.u32 %v2229, 4294901760
    %2231 = vmatpush.msra.mxu0 %v2230
    %v2232 = vand.u32 %v33, 4294901760
    %v2233 = vsub.f32 %v33, %v2232
    %v2234 = vand.u32 %v2233, 4294901760
    %v2235 = vsub.f32 %v2233, %v2234
    %v2236 = vand.u32 %v2235, 4294901760
    %2237 = vmatpush.msra.mxu0 %v2236
    %v2238 = vand.u32 %v2147, 4294901760
    %2239 = vmatmul.f32.gmra.mxu0 %v2238
    %v2240 = vpop.f32.mrf.mxu0
    %v2241 = vadd.f32 %v2180, %v2240
    %2242 = vdwg.mxu0
    %2243 = vmatpush.msra.mxu0 0.0
    %2244 = vmatpush.msra.mxu0 0.0
    %2245 = vmatpush.msra.mxu0 0.0
    %2246 = vmatpush.msra.mxu0 0.0
    %2247 = vmatpush.msra.mxu0 0.0
    %2248 = vmatpush.msra.mxu0 0.0
    %2249 = vmatpush.msra.mxu0 0.0
    %2250 = vmatpush.msra.mxu0 0.0
    %v2251 = vand.u32 %v40, 4294901760
    %v2252 = vsub.f32 %v40, %v2251
    %2253 = vmatpush.msra.mxu0 %v2252
    %v2254 = vand.u32 %v39, 4294901760
    %v2255 = vsub.f32 %v39, %v2254
    %2256 = vmatpush.msra.mxu0 %v2255
    %v2257 = vand.u32 %v38, 4294901760
    %v2258 = vsub.f32 %v38, %v2257
    %2259 = vmatpush.msra.mxu0 %v2258
    %v2260 = vand.u32 %v37, 4294901760
    %v2261 = vsub.f32 %v37, %v2260
    %2262 = vmatpush.msra.mxu0 %v2261
    %v2263 = vand.u32 %v36, 4294901760
    %v2264 = vsub.f32 %v36, %v2263
    %2265 = vmatpush.msra.mxu0 %v2264
    %v2266 = vand.u32 %v35, 4294901760
    %v2267 = vsub.f32 %v35, %v2266
    %2268 = vmatpush.msra.mxu0 %v2267
    %v2269 = vand.u32 %v34, 4294901760
    %v2270 = vsub.f32 %v34, %v2269
    %2271 = vmatpush.msra.mxu0 %v2270
    %v2272 = vand.u32 %v33, 4294901760
    %v2273 = vsub.f32 %v33, %v2272
    %2274 = vmatpush.msra.mxu0 %v2273
    %v2275 = vand.u32 %v2147, 4294901760
    %v2276 = vsub.f32 %v2147, %v2275
    %2277 = vmatmul.f32.gmra.mxu0 %v2276
    %v2278 = vpop.f32.mrf.mxu0
    %v2279 = vadd.f32 %v2241, %v2278
    %2280 = vdwg.mxu0
    %2281 = vmatpush.msra.mxu0 0.0
    %2282 = vmatpush.msra.mxu0 0.0
    %2283 = vmatpush.msra.mxu0 0.0
    %2284 = vmatpush.msra.mxu0 0.0
    %2285 = vmatpush.msra.mxu0 0.0
    %2286 = vmatpush.msra.mxu0 0.0
    %2287 = vmatpush.msra.mxu0 0.0
    %2288 = vmatpush.msra.mxu0 0.0
    %v2289 = vand.u32 %v40, 4294901760
    %2290 = vmatpush.msra.mxu0 %v2289
    %v2291 = vand.u32 %v39, 4294901760
    %2292 = vmatpush.msra.mxu0 %v2291
    %v2293 = vand.u32 %v38, 4294901760
    %2294 = vmatpush.msra.mxu0 %v2293
    %v2295 = vand.u32 %v37, 4294901760
    %2296 = vmatpush.msra.mxu0 %v2295
    %v2297 = vand.u32 %v36, 4294901760
    %2298 = vmatpush.msra.mxu0 %v2297
    %v2299 = vand.u32 %v35, 4294901760
    %2300 = vmatpush.msra.mxu0 %v2299
    %v2301 = vand.u32 %v34, 4294901760
    %2302 = vmatpush.msra.mxu0 %v2301
    %v2303 = vand.u32 %v33, 4294901760
    %2304 = vmatpush.msra.mxu0 %v2303
    %v2305 = vand.u32 %v2147, 4294901760
    %v2306 = vsub.f32 %v2147, %v2305
    %v2307 = vand.u32 %v2306, 4294901760
    %2308 = vmatmul.f32.gmra.mxu0 %v2307
    %v2309 = vpop.f32.mrf.mxu0
    %v2310 = vadd.f32 %v2279, %v2309
    %2311 = vdwg.mxu0
    %2312 = vmatpush.msra.mxu0 0.0
    %2313 = vmatpush.msra.mxu0 0.0
    %2314 = vmatpush.msra.mxu0 0.0
    %2315 = vmatpush.msra.mxu0 0.0
    %2316 = vmatpush.msra.mxu0 0.0
    %2317 = vmatpush.msra.mxu0 0.0
    %2318 = vmatpush.msra.mxu0 0.0
    %2319 = vmatpush.msra.mxu0 0.0
    %v2320 = vand.u32 %v40, 4294901760
    %v2321 = vsub.f32 %v40, %v2320
    %v2322 = vand.u32 %v2321, 4294901760
    %2323 = vmatpush.msra.mxu0 %v2322
    %v2324 = vand.u32 %v39, 4294901760
    %v2325 = vsub.f32 %v39, %v2324
    %v2326 = vand.u32 %v2325, 4294901760
    %2327 = vmatpush.msra.mxu0 %v2326
    %v2328 = vand.u32 %v38, 4294901760
    %v2329 = vsub.f32 %v38, %v2328
    %v2330 = vand.u32 %v2329, 4294901760
    %2331 = vmatpush.msra.mxu0 %v2330
    %v2332 = vand.u32 %v37, 4294901760
    %v2333 = vsub.f32 %v37, %v2332
    %v2334 = vand.u32 %v2333, 4294901760
    %2335 = vmatpush.msra.mxu0 %v2334
    %v2336 = vand.u32 %v36, 4294901760
    %v2337 = vsub.f32 %v36, %v2336
    %v2338 = vand.u32 %v2337, 4294901760
    %2339 = vmatpush.msra.mxu0 %v2338
    %v2340 = vand.u32 %v35, 4294901760
    %v2341 = vsub.f32 %v35, %v2340
    %v2342 = vand.u32 %v2341, 4294901760
    %2343 = vmatpush.msra.mxu0 %v2342
    %v2344 = vand.u32 %v34, 4294901760
    %v2345 = vsub.f32 %v34, %v2344
    %v2346 = vand.u32 %v2345, 4294901760
    %2347 = vmatpush.msra.mxu0 %v2346
    %v2348 = vand.u32 %v33, 4294901760
    %v2349 = vsub.f32 %v33, %v2348
    %v2350 = vand.u32 %v2349, 4294901760
    %2351 = vmatpush.msra.mxu0 %v2350
    %v2352 = vand.u32 %v2147, 4294901760
    %2353 = vmatmul.f32.gmra.mxu0 %v2352
    %v2354 = vpop.f32.mrf.mxu0
    %v2355 = vadd.f32 %v2310, %v2354
    %2356 = vdwg.mxu0
    %2357 = vmatpush.msra.mxu0 0.0
    %2358 = vmatpush.msra.mxu0 0.0
    %2359 = vmatpush.msra.mxu0 0.0
    %2360 = vmatpush.msra.mxu0 0.0
    %2361 = vmatpush.msra.mxu0 0.0
    %2362 = vmatpush.msra.mxu0 0.0
    %2363 = vmatpush.msra.mxu0 0.0
    %2364 = vmatpush.msra.mxu0 0.0
    %v2365 = vand.u32 %v40, 4294901760
    %2366 = vmatpush.msra.mxu0 %v2365
    %v2367 = vand.u32 %v39, 4294901760
    %2368 = vmatpush.msra.mxu0 %v2367
    %v2369 = vand.u32 %v38, 4294901760
    %2370 = vmatpush.msra.mxu0 %v2369
    %v2371 = vand.u32 %v37, 4294901760
    %2372 = vmatpush.msra.mxu0 %v2371
    %v2373 = vand.u32 %v36, 4294901760
    %2374 = vmatpush.msra.mxu0 %v2373
    %v2375 = vand.u32 %v35, 4294901760
    %2376 = vmatpush.msra.mxu0 %v2375
    %v2377 = vand.u32 %v34, 4294901760
    %2378 = vmatpush.msra.mxu0 %v2377
    %v2379 = vand.u32 %v33, 4294901760
    %2380 = vmatpush.msra.mxu0 %v2379
    %v2381 = vand.u32 %v2147, 4294901760
    %2382 = vmatmul.f32.gmra.mxu0 %v2381
    %v2383 = vpop.f32.mrf.mxu0
    %v2384 = vadd.f32 %v2355, %v2383
    %2385 = vdwg.mxu0
    %v2386 = vadd.f32 %v449, %v2384
    %v2387 = vtanh.pop %v2386
    %v2388 = vld [vmem:[%s2] sm:$0xff]
    %v2389 = vld [vmem:[%s2 + $0x8] sm:$0xff]
    %v2390 = vld [vmem:[%s2 + $0x10] sm:$0xff]
    %v2391 = vld [vmem:[%s2 + $0x18] sm:$0xff]
    %v2392 = vld [vmem:[%s2 + $0x20] sm:$0xff]
    %v2393 = vld [vmem:[%s2 + $0x28] sm:$0xff]
    %v2394 = vld [vmem:[%s2 + $0x30] sm:$0xff]
    %v2395 = vld [vmem:[%s2 + $0x38] sm:$0xff]
    %v2396 = vld [vmem:[%s2 + $0x40] sm:$0x1]
    %v2397 = vperm.slane %v2396, 0
    %v2399 = vsel %vm451, %v2387, 0
    %2401 = vmatpush.msra.mxu0 0.0
    %2402 = vmatpush.msra.mxu0 0.0
    %2403 = vmatpush.msra.mxu0 0.0
    %2404 = vmatpush.msra.mxu0 0.0
    %2405 = vmatpush.msra.mxu0 0.0
    %2406 = vmatpush.msra.mxu0 0.0
    %2407 = vmatpush.msra.mxu0 0.0
    %2408 = vmatpush.msra.mxu0 0.0
    %v2409 = vand.u32 %v2395, 4294901760
    %2410 = vmatpush.msra.mxu0 %v2409
    %v2411 = vand.u32 %v2394, 4294901760
    %2412 = vmatpush.msra.mxu0 %v2411
    %v2413 = vand.u32 %v2393, 4294901760
    %2414 = vmatpush.msra.mxu0 %v2413
    %v2415 = vand.u32 %v2392, 4294901760
    %2416 = vmatpush.msra.mxu0 %v2415
    %v2417 = vand.u32 %v2391, 4294901760
    %2418 = vmatpush.msra.mxu0 %v2417
    %v2419 = vand.u32 %v2390, 4294901760
    %2420 = vmatpush.msra.mxu0 %v2419
    %v2421 = vand.u32 %v2389, 4294901760
    %2422 = vmatpush.msra.mxu0 %v2421
    %v2423 = vand.u32 %v2388, 4294901760
    %2424 = vmatpush.msra.mxu0 %v2423
    %v2425 = vand.u32 %v2399, 4294901760
    %v2426 = vsub.f32 %v2399, %v2425
    %v2427 = vand.u32 %v2426, 4294901760
    %v2428 = vsub.f32 %v2426, %v2427
    %v2429 = vand.u32 %v2428, 4294901760
    %2430 = vmatmul.f32.gmra.mxu0 %v2429
    %v2431 = vpop.f32.mrf.mxu0
    %v2432 = vadd.f32 %v2397, %v2431
    %2433 = vdwg.mxu0
    %2434 = vmatpush.msra.mxu0 0.0
    %2435 = vmatpush.msra.mxu0 0.0
    %2436 = vmatpush.msra.mxu0 0.0
    %2437 = vmatpush.msra.mxu0 0.0
    %2438 = vmatpush.msra.mxu0 0.0
    %2439 = vmatpush.msra.mxu0 0.0
    %2440 = vmatpush.msra.mxu0 0.0
    %2441 = vmatpush.msra.mxu0 0.0
    %v2442 = vand.u32 %v2395, 4294901760
    %v2443 = vsub.f32 %v2395, %v2442
    %v2444 = vand.u32 %v2443, 4294901760
    %v2445 = vsub.f32 %v2443, %v2444
    %v2446 = vand.u32 %v2445, 4294901760
    %2447 = vmatpush.msra.mxu0 %v2446
    %v2448 = vand.u32 %v2394, 4294901760
    %v2449 = vsub.f32 %v2394, %v2448
    %v2450 = vand.u32 %v2449, 4294901760
    %v2451 = vsub.f32 %v2449, %v2450
    %v2452 = vand.u32 %v2451, 4294901760
    %2453 = vmatpush.msra.mxu0 %v2452
    %v2454 = vand.u32 %v2393, 4294901760
    %v2455 = vsub.f32 %v2393, %v2454
    %v2456 = vand.u32 %v2455, 4294901760
    %v2457 = vsub.f32 %v2455, %v2456
    %v2458 = vand.u32 %v2457, 4294901760
    %2459 = vmatpush.msra.mxu0 %v2458
    %v2460 = vand.u32 %v2392, 4294901760
    %v2461 = vsub.f32 %v2392, %v2460
    %v2462 = vand.u32 %v2461, 4294901760
    %v2463 = vsub.f32 %v2461, %v2462
    %v2464 = vand.u32 %v2463, 4294901760
    %2465 = vmatpush.msra.mxu0 %v2464
    %v2466 = vand.u32 %v2391, 4294901760
    %v2467 = vsub.f32 %v2391, %v2466
    %v2468 = vand.u32 %v2467, 4294901760
    %v2469 = vsub.f32 %v2467, %v2468
    %v2470 = vand.u32 %v2469, 4294901760
    %2471 = vmatpush.msra.mxu0 %v2470
    %v2472 = vand.u32 %v2390, 4294901760
    %v2473 = vsub.f32 %v2390, %v2472
    %v2474 = vand.u32 %v2473, 4294901760
    %v2475 = vsub.f32 %v2473, %v2474
    %v2476 = vand.u32 %v2475, 4294901760
    %2477 = vmatpush.msra.mxu0 %v2476
    %v2478 = vand.u32 %v2389, 4294901760
    %v2479 = vsub.f32 %v2389, %v2478
    %v2480 = vand.u32 %v2479, 4294901760
    %v2481 = vsub.f32 %v2479, %v2480
    %v2482 = vand.u32 %v2481, 4294901760
    %2483 = vmatpush.msra.mxu0 %v2482
    %v2484 = vand.u32 %v2388, 4294901760
    %v2485 = vsub.f32 %v2388, %v2484
    %v2486 = vand.u32 %v2485, 4294901760
    %v2487 = vsub.f32 %v2485, %v2486
    %v2488 = vand.u32 %v2487, 4294901760
    %2489 = vmatpush.msra.mxu0 %v2488
    %v2490 = vand.u32 %v2399, 4294901760
    %2491 = vmatmul.f32.gmra.mxu0 %v2490
    %v2492 = vpop.f32.mrf.mxu0
    %v2493 = vadd.f32 %v2432, %v2492
    %2494 = vdwg.mxu0
    %2495 = vmatpush.msra.mxu0 0.0
    %2496 = vmatpush.msra.mxu0 0.0
    %2497 = vmatpush.msra.mxu0 0.0
    %2498 = vmatpush.msra.mxu0 0.0
    %2499 = vmatpush.msra.mxu0 0.0
    %2500 = vmatpush.msra.mxu0 0.0
    %2501 = vmatpush.msra.mxu0 0.0
    %2502 = vmatpush.msra.mxu0 0.0
    %v2503 = vand.u32 %v2395, 4294901760
    %v2504 = vsub.f32 %v2395, %v2503
    %2505 = vmatpush.msra.mxu0 %v2504
    %v2506 = vand.u32 %v2394, 4294901760
    %v2507 = vsub.f32 %v2394, %v2506
    %2508 = vmatpush.msra.mxu0 %v2507
    %v2509 = vand.u32 %v2393, 4294901760
    %v2510 = vsub.f32 %v2393, %v2509
    %2511 = vmatpush.msra.mxu0 %v2510
    %v2512 = vand.u32 %v2392, 4294901760
    %v2513 = vsub.f32 %v2392, %v2512
    %2514 = vmatpush.msra.mxu0 %v2513
    %v2515 = vand.u32 %v2391, 4294901760
    %v2516 = vsub.f32 %v2391, %v2515
    %2517 = vmatpush.msra.mxu0 %v2516
    %v2518 = vand.u32 %v2390, 4294901760
    %v2519 = vsub.f32 %v2390, %v2518
    %2520 = vmatpush.msra.mxu0 %v2519
    %v2521 = vand.u32 %v2389, 4294901760
    %v2522 = vsub.f32 %v2389, %v2521
    %2523 = vmatpush.msra.mxu0 %v2522
    %v2524 = vand.u32 %v2388, 4294901760
    %v2525 = vsub.f32 %v2388, %v2524
    %2526 = vmatpush.msra.mxu0 %v2525
    %v2527 = vand.u32 %v2399, 4294901760
    %v2528 = vsub.f32 %v2399, %v2527
    %2529 = vmatmul.f32.gmra.mxu0 %v2528
    %v2530 = vpop.f32.mrf.mxu0
    %v2531 = vadd.f32 %v2493, %v2530
    %2532 = vdwg.mxu0
    %2533 = vmatpush.msra.mxu0 0.0
    %2534 = vmatpush.msra.mxu0 0.0
    %2535 = vmatpush.msra.mxu0 0.0
    %2536 = vmatpush.msra.mxu0 0.0
    %2537 = vmatpush.msra.mxu0 0.0
    %2538 = vmatpush.msra.mxu0 0.0
    %2539 = vmatpush.msra.mxu0 0.0
    %2540 = vmatpush.msra.mxu0 0.0
    %v2541 = vand.u32 %v2395, 4294901760
    %2542 = vmatpush.msra.mxu0 %v2541
    %v2543 = vand.u32 %v2394, 4294901760
    %2544 = vmatpush.msra.mxu0 %v2543
    %v2545 = vand.u32 %v2393, 4294901760
    %2546 = vmatpush.msra.mxu0 %v2545
    %v2547 = vand.u32 %v2392, 4294901760
    %2548 = vmatpush.msra.mxu0 %v2547
    %v2549 = vand.u32 %v2391, 4294901760
    %2550 = vmatpush.msra.mxu0 %v2549
    %v2551 = vand.u32 %v2390, 4294901760
    %2552 = vmatpush.msra.mxu0 %v2551
    %v2553 = vand.u32 %v2389, 4294901760
    %2554 = vmatpush.msra.mxu0 %v2553
    %v2555 = vand.u32 %v2388, 4294901760
    %2556 = vmatpush.msra.mxu0 %v2555
    %v2557 = vand.u32 %v2399, 4294901760
    %v2558 = vsub.f32 %v2399, %v2557
    %v2559 = vand.u32 %v2558, 4294901760
    %2560 = vmatmul.f32.gmra.mxu0 %v2559
    %v2561 = vpop.f32.mrf.mxu0
    %v2562 = vadd.f32 %v2531, %v2561
    %2563 = vdwg.mxu0
    %2564 = vmatpush.msra.mxu0 0.0
    %2565 = vmatpush.msra.mxu0 0.0
    %2566 = vmatpush.msra.mxu0 0.0
    %2567 = vmatpush.msra.mxu0 0.0
    %2568 = vmatpush.msra.mxu0 0.0
    %2569 = vmatpush.msra.mxu0 0.0
    %2570 = vmatpush.msra.mxu0 0.0
    %2571 = vmatpush.msra.mxu0 0.0
    %v2572 = vand.u32 %v2395, 4294901760
    %v2573 = vsub.f32 %v2395, %v2572
    %v2574 = vand.u32 %v2573, 4294901760
    %2575 = vmatpush.msra.mxu0 %v2574
    %v2576 = vand.u32 %v2394, 4294901760
    %v2577 = vsub.f32 %v2394, %v2576
    %v2578 = vand.u32 %v2577, 4294901760
    %2579 = vmatpush.msra.mxu0 %v2578
    %v2580 = vand.u32 %v2393, 4294901760
    %v2581 = vsub.f32 %v2393, %v2580
    %v2582 = vand.u32 %v2581, 4294901760
    %2583 = vmatpush.msra.mxu0 %v2582
    %v2584 = vand.u32 %v2392, 4294901760
    %v2585 = vsub.f32 %v2392, %v2584
    %v2586 = vand.u32 %v2585, 4294901760
    %2587 = vmatpush.msra.mxu0 %v2586
    %v2588 = vand.u32 %v2391, 4294901760
    %v2589 = vsub.f32 %v2391, %v2588
    %v2590 = vand.u32 %v2589, 4294901760
    %2591 = vmatpush.msra.mxu0 %v2590
    %v2592 = vand.u32 %v2390, 4294901760
    %v2593 = vsub.f32 %v2390, %v2592
    %v2594 = vand.u32 %v2593, 4294901760
    %2595 = vmatpush.msra.mxu0 %v2594
    %v2596 = vand.u32 %v2389, 4294901760
    %v2597 = vsub.f32 %v2389, %v2596
    %v2598 = vand.u32 %v2597, 4294901760
    %2599 = vmatpush.msra.mxu0 %v2598
    %v2600 = vand.u32 %v2388, 4294901760
    %v2601 = vsub.f32 %v2388, %v2600
    %v2602 = vand.u32 %v2601, 4294901760
    %2603 = vmatpush.msra.mxu0 %v2602
    %v2604 = vand.u32 %v2399, 4294901760
    %2605 = vmatmul.f32.gmra.mxu0 %v2604
    %v2606 = vpop.f32.mrf.mxu0
    %v2607 = vadd.f32 %v2562, %v2606
    %2608 = vdwg.mxu0
    %2609 = vmatpush.msra.mxu0 0.0
    %2610 = vmatpush.msra.mxu0 0.0
    %2611 = vmatpush.msra.mxu0 0.0
    %2612 = vmatpush.msra.mxu0 0.0
    %2613 = vmatpush.msra.mxu0 0.0
    %2614 = vmatpush.msra.mxu0 0.0
    %2615 = vmatpush.msra.mxu0 0.0
    %2616 = vmatpush.msra.mxu0 0.0
    %v2617 = vand.u32 %v2395, 4294901760
    %2618 = vmatpush.msra.mxu0 %v2617
    %v2619 = vand.u32 %v2394, 4294901760
    %2620 = vmatpush.msra.mxu0 %v2619
    %v2621 = vand.u32 %v2393, 4294901760
    %2622 = vmatpush.msra.mxu0 %v2621
    %v2623 = vand.u32 %v2392, 4294901760
    %2624 = vmatpush.msra.mxu0 %v2623
    %v2625 = vand.u32 %v2391, 4294901760
    %2626 = vmatpush.msra.mxu0 %v2625
    %v2627 = vand.u32 %v2390, 4294901760
    %2628 = vmatpush.msra.mxu0 %v2627
    %v2629 = vand.u32 %v2389, 4294901760
    %2630 = vmatpush.msra.mxu0 %v2629
    %v2631 = vand.u32 %v2388, 4294901760
    %2632 = vmatpush.msra.mxu0 %v2631
    %v2633 = vand.u32 %v2399, 4294901760
    %2634 = vmatmul.f32.gmra.mxu0 %v2633
    %v2635 = vpop.f32.mrf.mxu0
    %v2636 = vadd.f32 %v2607, %v2635
    %2637 = vdwg.mxu0
    %2638 = vst [vmem:[%s3] sm:$0xff] %v2636
    // Predicated region
    $region18: #{forward.1} parent=1 // pred_check
      _
    $region19: #{forward.1} parent=1 // pred_check_branch
      %2640 = sbr.rel (0) target = $region21
    $region20: #{forward.1} parent=1 // pred_region
      _
    $region21: #{forward.1} parent=1 // pred_fallthru
      _
    // Predicated region
    $region22: #{forward.1} parent=1 // pred_check
      _
    $region23: #{forward.1} parent=1 // pred_check_branch
      %2642 = sbr.rel (0) target = $region25
    $region24: #{forward.1} parent=1 // pred_region
      _
    $region25: #{forward.1} parent=1 // pred_fallthru
      _
    %2643 = vsyncpa [#allocation3], 1

</llo_original>
